<compile_context>
chip_gen: v5e
topology: v5e:2x2
jax: 0.10.0
libtpu: 0.0.40
codegen_flags: <defaults>
</compile_context>

<pallas_src>
import functools

import jax
import jax.numpy as jnp
from jax.experimental import pallas as pl
from jax.experimental.pallas import tpu as pltpu


EXPANSION = 4
_LANE = 128                       # lane width: internal planes padded to this
_VMEM_LIMIT = 48 * 1024 * 1024    # fits v5e/v6e (128 MiB) and v7x (64 MiB)


# ---------------------------------------------------------------------------
# small helpers
# ---------------------------------------------------------------------------
def _round_up(x, m):
    return ((x + m - 1) // m) * m


def _pad_dim(a, axis, size):
    if a.shape[axis] == size:
        return a
    pad = [(0, 0)] * a.ndim
    pad[axis] = (0, size - a.shape[axis])
    return jnp.pad(a, pad)


def _pick_row_tile(m, max_tile=1024):
    """Largest row tile from a fixed candidate set that divides m (keeps >=2
    grid steps when possible so DMA overlaps compute)."""
    for t in (max_tile, 512, 256, 128, 64, 32, 16, 8):
        if t < m and m % t == 0:
            return t
    return m


def _fold_bn(w, gamma, beta, mean, var, eps=1e-5):
    """Fold inference BatchNorm into the conv weight (output-channel axis 0)."""
    scale = gamma / jnp.sqrt(var + eps)
    bias = beta - mean * scale
    return w * scale.reshape((-1,) + (1,) * (w.ndim - 1)), bias


# ---------------------------------------------------------------------------
# Pallas kernels
# ---------------------------------------------------------------------------
def _matmul_bias_relu_kernel(x_ref, w_ref, b_ref, o_ref):
    """conv1: out = relu(x @ w_folded + bias); bf16 MXU inputs, f32 accumulate."""
    acc = jnp.dot(x_ref[...].astype(jnp.bfloat16), w_ref[...],
                  preferred_element_type=jnp.float32)
    o_ref[...] = jnp.maximum(acc + b_ref[...], 0.0).astype(o_ref.dtype)


def _conv2_kernel(x_ref, w_ref, b_ref, o_ref, acc_ref, *, stride, Wo):
    """3x3 conv: one padded input row per step, dy (row tap) is the reduction
    grid axis; the three column taps are static slices of the row block."""
    dy = pl.program_id(2)

    @pl.when(dy == 0)
    def _init():
        acc_ref[...] = jnp.zeros_like(acc_ref)

    for dx in range(3):
        if stride == 1:
            col = x_ref[dx:dx + Wo, :]                       # (Wo, Pp) bf16
        else:
            # stride 2: padded column 2*wo + dx  ->  (half = wo + dx//2, parity = dx%2)
            col = x_ref[dx // 2:dx // 2 + Wo, dx % 2, :]     # (Wo, Pp) bf16
        acc_ref[...] += jnp.dot(col, w_ref[dy * 3 + dx],
                                preferred_element_type=jnp.float32)

    @pl.when(dy == 2)
    def _finalize():
        o_ref[...] = jnp.maximum(acc_ref[...] + b_ref[...], 0.0).astype(o_ref.dtype)


def _conv3_proj_kernel(x2_ref, w3_ref, xr_ref, ws_ref, b_ref, o_ref, *, stride):
    """conv3 + projection shortcut fused: relu(out2@w3 + x_s@ws + (b3+bs))."""
    acc = jnp.dot(x2_ref[...], w3_ref[...], preferred_element_type=jnp.float32)
    xs = xr_ref[...] if stride == 1 else xr_ref[:, 0, :]      # strided cols of x
    acc = acc + jnp.dot(xs.astype(jnp.bfloat16), ws_ref[...],
                        preferred_element_type=jnp.float32)
    o_ref[...] = jnp.maximum(acc + b_ref[...], 0.0).astype(o_ref.dtype)


def _conv3_identity_kernel(x2_ref, w3_ref, xr_ref, b_ref, o_ref):
    """conv3 + identity shortcut fused: relu(out2@w3 + b3 + x)."""
    acc = jnp.dot(x2_ref[...], w3_ref[...], preferred_element_type=jnp.float32)
    o_ref[...] = jnp.maximum(acc + b_ref[...] + xr_ref[...], 0.0).astype(o_ref.dtype)


# ---------------------------------------------------------------------------
# pallas_call wrappers
# ---------------------------------------------------------------------------
def _conv1_call(x2d, w, b):
    M, Cin = x2d.shape
    Pp = w.shape[1]
    TM = _pick_row_tile(M)
    return pl.pallas_call(
        _matmul_bias_relu_kernel,
        out_shape=jax.ShapeDtypeStruct((M, Pp), jnp.bfloat16),
        grid=(M // TM,),
        in_specs=[
            pl.BlockSpec((TM, Cin), lambda i: (i, 0)),
            pl.BlockSpec((Cin, Pp), lambda i: (0, 0)),
            pl.BlockSpec((1, Pp), lambda i: (0, 0)),
        ],
        out_specs=pl.BlockSpec((TM, Pp), lambda i: (i, 0)),
        compiler_params=pltpu.CompilerParams(
            dimension_semantics=("parallel",),
            vmem_limit_bytes=_VMEM_LIMIT),
    )(x2d, w, b)


def _conv2_call(out1, w2, b2, *, stride, Ho, Wo):
    N, H, W, Pp = out1.shape
    # Spatial zero-pad (padding=1): one small HBM round-trip of out1 (~1.1x),
    # versus the previous 9x im2col materialization.
    # TODO(synk): fold the pad into conv1's output spec / a fully fused block.
    x = jnp.pad(out1, ((0, 0), (1, 1), (1, 1), (0, 0)))
    if stride == 1:
        x_spec = pl.BlockSpec((None, None, W + 2, Pp),
                              lambda n, ho, dy: (n, ho * stride + dy, 0, 0))
    else:
        # Reorganize the padded width into (half, parity) so stride-2 column
        # taps become plain static slices inside the kernel (free reshape).
        x = x.reshape(N, H + 2, (W + 2) // 2, 2, Pp)
        x_spec = pl.BlockSpec((None, None, (W + 2) // 2, 2, Pp),
                              lambda n, ho, dy: (n, ho * stride + dy, 0, 0, 0))

    kernel = functools.partial(_conv2_kernel, stride=stride, Wo=Wo)
    return pl.pallas_call(
        kernel,
        out_shape=jax.ShapeDtypeStruct((N, Ho, Wo, Pp), jnp.bfloat16),
        grid=(N, Ho, 3),
        in_specs=[
            x_spec,
            pl.BlockSpec((9, Pp, Pp), lambda n, ho, dy: (0, 0, 0)),   # resident
            pl.BlockSpec((1, Pp), lambda n, ho, dy: (0, 0)),          # resident
        ],
        out_specs=pl.BlockSpec((None, None, Wo, Pp),
                               lambda n, ho, dy: (n, ho, 0, 0)),
        scratch_shapes=[pltpu.VMEM((Wo, Pp), jnp.float32)],
        compiler_params=pltpu.CompilerParams(
            dimension_semantics=("parallel", "parallel", "arbitrary"),
            vmem_limit_bytes=_VMEM_LIMIT),
    )(x, w2, b2)


def _conv3_proj_call(out2, w3, x, ws, bias, *, stride):
    N, Ho, Wo, Pp = out2.shape
    _, H, W, Cin = x.shape
    Cout = w3.shape[1]
    if stride == 1:
        xr = x
        xr_spec = pl.BlockSpec((None, None, W, Cin),
                               lambda n, ho: (n, ho, 0, 0))
    else:
        # (half, parity) split of W so the strided residual columns come from
        # the BlockSpec + a static parity index (no HBM strided slice).
        xr = x.reshape(N, H, W // 2, 2, Cin)
        xr_spec = pl.BlockSpec((None, None, W // 2, 2, Cin),
                               lambda n, ho: (n, ho * stride, 0, 0, 0))

    kernel = functools.partial(_conv3_proj_kernel, stride=stride)
    return pl.pallas_call(
        kernel,
        out_shape=jax.ShapeDtypeStruct((N, Ho, Wo, Cout), jnp.float32),
        grid=(N, Ho),
        in_specs=[
            pl.BlockSpec((None, None, Wo, Pp), lambda n, ho: (n, ho, 0, 0)),
            pl.BlockSpec((Pp, Cout), lambda n, ho: (0, 0)),
            xr_spec,
            pl.BlockSpec((Cin, Cout), lambda n, ho: (0, 0)),
            pl.BlockSpec((1, Cout), lambda n, ho: (0, 0)),
        ],
        out_specs=pl.BlockSpec((None, None, Wo, Cout), lambda n, ho: (n, ho, 0, 0)),
        compiler_params=pltpu.CompilerParams(
            dimension_semantics=("parallel", "parallel"),
            vmem_limit_bytes=_VMEM_LIMIT),
    )(out2, w3, xr, ws, bias)


def _conv3_identity_call(out2, w3, x, b3):
    N, Ho, Wo, Pp = out2.shape
    Cout = w3.shape[1]
    return pl.pallas_call(
        _conv3_identity_kernel,
        out_shape=jax.ShapeDtypeStruct((N, Ho, Wo, Cout), jnp.float32),
        grid=(N, Ho),
        in_specs=[
            pl.BlockSpec((None, None, Wo, Pp), lambda n, ho: (n, ho, 0, 0)),
            pl.BlockSpec((Pp, Cout), lambda n, ho: (0, 0)),
            pl.BlockSpec((None, None, Wo, Cout), lambda n, ho: (n, ho, 0, 0)),
            pl.BlockSpec((1, Cout), lambda n, ho: (0, 0)),
        ],
        out_specs=pl.BlockSpec((None, None, Wo, Cout), lambda n, ho: (n, ho, 0, 0)),
        compiler_params=pltpu.CompilerParams(
            dimension_semantics=("parallel", "parallel"),
            vmem_limit_bytes=_VMEM_LIMIT),
    )(out2, w3, x, b3)


# ---------------------------------------------------------------------------
# Bottleneck forward (NCHW interface, NHWC internally)
# ---------------------------------------------------------------------------
def bottleneck_forward(x_nchw, params, stride):
    if stride not in (1, 2):
        raise ValueError("ResNet Bottleneck uses stride 1 or 2 only")
    N, Cin, H, W = x_nchw.shape
    P = params["w1"].shape[0]
    Cout = EXPANSION * P
    Pp = _round_up(P, _LANE)                 # lane-dense internal planes
    if stride == 2 and W % 2 != 0:
        # TODO(synk): odd W with stride 2 would need a strided-load variant.
        raise ValueError("stride-2 path requires even W")

    # TODO(synk): when stacking blocks keep activations NHWC end-to-end and
    # hoist these layout transposes out of the per-block path.
    x = jnp.transpose(x_nchw, (0, 2, 3, 1)).astype(jnp.float32)      # NHWC

    # ---- fold BN into weights, pad planes to lane width, cast to bf16 ------
    w1, b1 = _fold_bn(params["w1"].reshape(P, Cin), *params["bn1"])
    w1 = _pad_dim(w1, 0, Pp).T.astype(jnp.bfloat16)                  # (Cin, Pp)
    b1 = _pad_dim(b1, 0, Pp).reshape(1, Pp)

    w2, b2 = _fold_bn(params["w2"], *params["bn2"])                  # (P,P,3,3)
    w2 = _pad_dim(_pad_dim(w2, 0, Pp), 1, Pp)                        # (Pp,Pp,3,3)
    w2 = jnp.transpose(w2, (2, 3, 1, 0)).reshape(9, Pp, Pp).astype(jnp.bfloat16)
    b2 = _pad_dim(b2, 0, Pp).reshape(1, Pp)

    w3, b3 = _fold_bn(params["w3"].reshape(Cout, P), *params["bn3"])
    w3 = _pad_dim(w3, 1, Pp).T.astype(jnp.bfloat16)                  # (Pp, Cout)
    b3 = b3.reshape(1, Cout)

    Ho = (H - 1) // stride + 1
    Wo = (W - 1) // stride + 1

    # conv1 (1x1) + bn1 + relu
    out1 = _conv1_call(x.reshape(N * H * W, Cin), w1, b1)            # bf16
    out1 = out1.reshape(N, H, W, Pp)

    # conv2 (3x3, stride, pad=1) + bn2 + relu  (no HBM im2col)
    out2 = _conv2_call(out1, w2, b2, stride=stride, Ho=Ho, Wo=Wo)    # bf16

    # conv3 (1x1) + bn3 + shortcut + relu  (shortcut fused in-kernel)
    if stride != 1 or Cin != Cout:
        ws, bs = _fold_bn(params["ws"].reshape(Cout, Cin), *params["bns"])
        ws = ws.T.astype(jnp.bfloat16)                               # (Cin, Cout)
        bias = b3 + bs.reshape(1, Cout)
        out = _conv3_proj_call(out2, w3, x, ws, bias, stride=stride)
    else:
        out = _conv3_identity_call(out2, w3, x, b3)

    return jnp.transpose(out, (0, 3, 1, 2))                          # NCHW


# ---------------------------------------------------------------------------
# Deterministic parameter init (PyTorch tensor shapes) and references
# ---------------------------------------------------------------------------
def init_params(key, in_planes, planes):
    ks = jax.random.split(key, 20)
    exp = EXPANSION

    def w(k, shape, fan_in):
        return jax.random.normal(k, shape, jnp.float32) / jnp.sqrt(float(fan_in))

    def bn(kg, kb, km, kv, c):
        gamma = 1.0 + 0.1 * jax.random.normal(kg, (c,), jnp.float32)
        beta = 0.1 * jax.random.normal(kb, (c,), jnp.float32)
        mean = 0.1 * jax.random.normal(km, (c,), jnp.float32)
        var = jax.random.uniform(kv, (c,), jnp.float32, minval=0.5, maxval=1.5)
        return (gamma, beta, mean, var)

    return {
        "w1": w(ks[0], (planes, in_planes, 1, 1), in_planes),
        "bn1": bn(ks[1], ks[2], ks[3], ks[4], planes),
        "w2": w(ks[5], (planes, planes, 3, 3), 9 * planes),
        "bn2": bn(ks[6], ks[7], ks[8], ks[9], planes),
        "w3": w(ks[10], (exp * planes, planes, 1, 1), planes),
        "bn3": bn(ks[11], ks[12], ks[13], ks[14], exp * planes),
        "ws": w(ks[15], (exp * planes, in_planes, 1, 1), in_planes),
        "bns": bn(ks[16], ks[17], ks[18], ks[19], exp * planes),
    }


def bottleneck_ref(x, params, stride):
    """Pure-JAX f32 reference matching the PyTorch forward (eval-mode BN)."""
    def conv(x, w, s, pad):
        return jax.lax.conv_general_dilated(
            x, w, window_strides=(s, s), padding=pad,
            dimension_numbers=("NCHW", "OIHW", "NCHW"),
            precision=jax.lax.Precision.HIGHEST)

    def bn(x, p, eps=1e-5):
        g, b, m, v = [t.reshape(1, -1, 1, 1) for t in p]
        return (x - m) / jnp.sqrt(v + eps) * g + b

    out = jax.nn.relu(bn(conv(x, params["w1"], 1, [(0, 0), (0, 0)]), params["bn1"]))
    out = jax.nn.relu(bn(conv(out, params["w2"], stride, [(1, 1), (1, 1)]), params["bn2"]))
    out = bn(conv(out, params["w3"], 1, [(0, 0), (0, 0)]), params["bn3"])
    Cin, Cout = x.shape[1], params["w3"].shape[0]
    if stride != 1 or Cin != Cout:
        short = bn(conv(x, params["ws"], stride, [(0, 0), (0, 0)]), params["bns"])
    else:
        short = x
    return jax.nn.relu(out + short)


def bottleneck_ref_bf16(x, params, stride, eps=1e-5):
    """Reference with the same numerics as the Pallas path: BN folded into the
    weights, conv operands rounded to bf16, f32 accumulation."""
    def fold(w, p):
        g, b, m, v = p
        s = g / jnp.sqrt(v + eps)
        wf = (w * s.reshape((-1,) + (1,) * (w.ndim - 1))).astype(jnp.bfloat16)
        return wf, (b - m * s).reshape(1, -1, 1, 1)

    def conv(x, w, s, pad):
        return jax.lax.conv_general_dilated(
            x.astype(jnp.bfloat16), w, window_strides=(s, s), padding=pad,
            dimension_numbers=("NCHW", "OIHW", "NCHW"),
            preferred_element_type=jnp.float32)

    w1, b1 = fold(params["w1"], params["bn1"])
    w2, b2 = fold(params["w2"], params["bn2"])
    w3, b3 = fold(params["w3"], params["bn3"])

    out = jax.nn.relu(conv(x, w1, 1, [(0, 0), (0, 0)]) + b1).astype(jnp.bfloat16)
    out = jax.nn.relu(conv(out, w2, stride, [(1, 1), (1, 1)]) + b2).astype(jnp.bfloat16)
    out = conv(out, w3, 1, [(0, 0), (0, 0)]) + b3

    Cin, Cout = x.shape[1], params["w3"].shape[0]
    if stride != 1 or Cin != Cout:
        ws, bs = fold(params["ws"], params["bns"])
        short = conv(x, ws, stride, [(0, 0), (0, 0)]) + bs
    else:
        short = x
    return jax.nn.relu(out + short)


# ---------------------------------------------------------------------------
if __name__ == "__main__":
    key = jax.random.PRNGKey(0)
    k_x1, k_p1, k_x2, k_p2 = jax.random.split(key, 4)

    fwd = jax.jit(bottleneck_forward, static_argnums=2)

    # -- case 1: projection shortcut (stride 2, 4 -> 16 channels) ------------
    in_planes, planes, stride = 4, 4, 2
    x = jax.random.normal(k_x1, (2, in_planes, 16, 16), jnp.float32)
    params = init_params(k_p1, in_planes, planes)
    out = jax.block_until_ready(fwd(x, params, stride))
    assert out.shape == (2, EXPANSION * planes, 8, 8), out.shape
    ref_b = bottleneck_ref_bf16(x, params, stride)   # same rounding as kernel
    ref_f = bottleneck_ref(x, params, stride)        # PyTorch f32 semantics
    assert jnp.allclose(out, ref_b, atol=5e-3, rtol=5e-3), \
        float(jnp.max(jnp.abs(out - ref_b)))
    assert jnp.allclose(out, ref_f, atol=5e-2, rtol=5e-2), \
        float(jnp.max(jnp.abs(out - ref_f)))

    # -- case 2: identity shortcut (stride 1, in_planes == expansion*planes) -
    in_planes, planes, stride = 16, 4, 1
    x = jax.random.normal(k_x2, (2, in_planes, 8, 8), jnp.float32)
    params = init_params(k_p2, in_planes, planes)
    out = jax.block_until_ready(fwd(x, params, stride))
    assert out.shape == (2, EXPANSION * planes, 8, 8), out.shape
    ref_b = bottleneck_ref_bf16(x, params, stride)
    ref_f = bottleneck_ref(x, params, stride)
    assert jnp.allclose(out, ref_b, atol=5e-3, rtol=5e-3), \
        float(jnp.max(jnp.abs(out - ref_b)))
    assert jnp.allclose(out, ref_f, atol=5e-2, rtol=5e-2), \
        float(jnp.max(jnp.abs(out - ref_f)))

    print("KERNEL_OK")
</pallas_src>

<mosaic_0001>
module attributes {stable_mosaic.version = 11 : i64} {
  func.func @_matmul_bias_relu_kernel(%arg0: i32, %arg1: memref<256x4xf32, #tpu.memory_space<vmem>>, %arg2: memref<4x128xbf16, #tpu.memory_space<vmem>>, %arg3: memref<1x128xf32, #tpu.memory_space<vmem>>, %arg4: memref<256x128xbf16, #tpu.memory_space<vmem>>) attributes {dimension_semantics = [#tpu.dimension_semantics<parallel>], iteration_bounds = array<i64: 2>, scalar_prefetch = 0 : i64, scratch_operands = 0 : i64, tpu.core_type = #tpu.core_type<tc>, window_params = [{transform_indices = @transform_0, window_bounds = array<i64: 256, 4>}, {pipeline_mode = #tpu.pipeline_mode<synchronous>, transform_indices = @transform_1, window_bounds = array<i64: 4, 128>}, {pipeline_mode = #tpu.pipeline_mode<synchronous>, transform_indices = @transform_2, window_bounds = array<i64: 1, 128>}, {transform_indices = @transform_3, window_bounds = array<i64: 256, 128>}]} {
    %c0 = arith.constant 0 : index
    %c0_0 = arith.constant 0 : index
    %0 = vector.load %arg1[%c0, %c0_0] : memref<256x4xf32, #tpu.memory_space<vmem>>, vector<256x4xf32>
    %1 = arith.truncf %0 : vector<256x4xf32> to vector<256x4xbf16>
    %c0_1 = arith.constant 0 : index
    %c0_2 = arith.constant 0 : index
    %2 = vector.load %arg2[%c0_1, %c0_2] : memref<4x128xbf16, #tpu.memory_space<vmem>>, vector<4x128xbf16>
    %cst = arith.constant dense<0.000000e+00> : vector<256x128xf32>
    %3 = tpu.matmul %1, %2, %cst {dimension_numbers = #tpu.dot_dimension_numbers<[1], [0], [0], [1], [0, 0, 1, 1], [], []>} : vector<256x4xbf16>, vector<4x128xbf16>, vector<256x128xf32> -> vector<256x128xf32>
    %c0_3 = arith.constant 0 : index
    %c0_4 = arith.constant 0 : index
    %4 = vector.load %arg3[%c0_3, %c0_4] : memref<1x128xf32, #tpu.memory_space<vmem>>, vector<1x128xf32>
    %5 = vector.broadcast %4 : vector<1x128xf32> to vector<256x128xf32>
    %6 = arith.addf %3, %5 : vector<256x128xf32>
    %cst_5 = arith.constant 0.000000e+00 : f32
    %7 = vector.broadcast %cst_5 : f32 to vector<256x128xf32>
    %8 = arith.maximumf %6, %7 : vector<256x128xf32>
    %9 = arith.truncf %8 : vector<256x128xf32> to vector<256x128xbf16>
    %c0_6 = arith.constant 0 : index
    %c0_7 = arith.constant 0 : index
    %10 = vector.load %arg4[%c0_6, %c0_7] : memref<256x128xbf16, #tpu.memory_space<vmem>>, vector<256x128xbf16>
    tpu.vector_store %arg4[%c0_6, %c0_7], %9 {strides = array<i32>} : memref<256x128xbf16, #tpu.memory_space<vmem>>, vector<256x128xbf16>,
    return
  }
  func.func @transform_0(%arg0: i32) -> (i32, i32) {
    %c0_i32 = arith.constant 0 : i32
    %c0_i32_0 = arith.constant 0 : i32
    return %arg0, %c0_i32 : i32, i32
  }
  func.func @transform_1(%arg0: i32) -> (i32, i32) {
    %c0_i32 = arith.constant 0 : i32
    %c0_i32_0 = arith.constant 0 : i32
    %c0_i32_1 = arith.constant 0 : i32
    return %c0_i32, %c0_i32_0 : i32, i32
  }
  func.func @transform_2(%arg0: i32) -> (i32, i32) {
    %c0_i32 = arith.constant 0 : i32
    %c0_i32_0 = arith.constant 0 : i32
    %c0_i32_1 = arith.constant 0 : i32
    return %c0_i32, %c0_i32_0 : i32, i32
  }
  func.func @transform_3(%arg0: i32) -> (i32, i32) {
    %c0_i32 = arith.constant 0 : i32
    %c0_i32_0 = arith.constant 0 : i32
    return %arg0, %c0_i32 : i32, i32
  }
}

module attributes {stable_mosaic.version = 11 : i64} {
  func.func @_conv2_kernel(%arg0: i32, %arg1: i32, %arg2: i32, %arg3: memref<1x1x9x2x128xbf16, #tpu.memory_space<vmem>>, %arg4: memref<9x128x128xbf16, #tpu.memory_space<vmem>>, %arg5: memref<1x128xf32, #tpu.memory_space<vmem>>, %arg6: memref<1x1x8x128xbf16, #tpu.memory_space<vmem>>, %arg7: memref<8x128xf32, #tpu.memory_space<vmem>>) attributes {dimension_semantics = [#tpu.dimension_semantics<parallel>, #tpu.dimension_semantics<parallel>, #tpu.dimension_semantics<arbitrary>], iteration_bounds = array<i64: 2, 8, 3>, scalar_prefetch = 0 : i64, scratch_operands = 1 : i64, tpu.core_type = #tpu.core_type<tc>, window_params = [{transform_indices = @transform_0, window_bounds = array<i64: 1, 1, 9, 2, 128>}, {pipeline_mode = #tpu.pipeline_mode<synchronous>, transform_indices = @transform_1, window_bounds = array<i64: 9, 128, 128>}, {pipeline_mode = #tpu.pipeline_mode<synchronous>, transform_indices = @transform_2, window_bounds = array<i64: 1, 128>}, {transform_indices = @transform_3, window_bounds = array<i64: 1, 1, 8, 128>}]} {
    %c0_i32 = arith.constant 0 : i32
    %0 = arith.cmpi eq, %arg2, %c0_i32 : i32
    %1 = arith.extui %0 : i1 to i32
    %c0_i32_0 = arith.constant 0 : i32
    %2 = arith.cmpi ne, %1, %c0_i32_0 : i32
    scf.if %2 {
      %cst_39 = arith.constant 0.000000e+00 : f32
      %39 = vector.broadcast %cst_39 : f32 to vector<8x128xf32>
      %c0_40 = arith.constant 0 : index
      %c0_41 = arith.constant 0 : index
      %40 = vector.load %arg7[%c0_40, %c0_41] : memref<8x128xf32, #tpu.memory_space<vmem>>, vector<8x128xf32>
      tpu.vector_store %arg7[%c0_40, %c0_41], %39 {strides = array<i32>} : memref<8x128xf32, #tpu.memory_space<vmem>>, vector<8x128xf32>,
    } else {
    }
    %c0 = arith.constant 0 : index
    %c0_1 = arith.constant 0 : index
    %c0_2 = arith.constant 0 : index
    %c0_3 = arith.constant 0 : index
    %c0_4 = arith.constant 0 : index
    %3 = vector.load %arg3[%c0, %c0_1, %c0_2, %c0_3, %c0_4] : memref<1x1x9x2x128xbf16, #tpu.memory_space<vmem>>, vector<1x1x8x1x128xbf16>
    %4 = vector.shape_cast %3 : vector<1x1x8x1x128xbf16> to vector<8x128xbf16>
    %c0_5 = arith.constant 0 : index
    %c0_6 = arith.constant 0 : index
    %5 = vector.load %arg7[%c0_5, %c0_6] : memref<8x128xf32, #tpu.memory_space<vmem>>, vector<8x128xf32>
    %c3_i32 = arith.constant 3 : i32
    %6 = arith.muli %arg2, %c3_i32 : i32
    %c0_i32_7 = arith.constant 0 : i32
    %7 = arith.addi %6, %c0_i32_7 : i32
    %8 = arith.index_cast %7 : i32 to index
    %c0_8 = arith.constant 0 : index
    %c0_9 = arith.constant 0 : index
    %9 = vector.load %arg4[%8, %c0_8, %c0_9] : memref<9x128x128xbf16, #tpu.memory_space<vmem>>, vector<1x128x128xbf16>
    %10 = vector.shape_cast %9 : vector<1x128x128xbf16> to vector<128x128xbf16>
    %cst = arith.constant dense<0.000000e+00> : vector<8x128xf32>
    %11 = tpu.matmul %4, %10, %cst {dimension_numbers = #tpu.dot_dimension_numbers<[1], [0], [0], [1], [0, 0, 1, 1], [], []>} : vector<8x128xbf16>, vector<128x128xbf16>, vector<8x128xf32> -> vector<8x128xf32>
    %12 = arith.addf %5, %11 : vector<8x128xf32>
    %c0_10 = arith.constant 0 : index
    %c0_11 = arith.constant 0 : index
    %13 = vector.load %arg7[%c0_10, %c0_11] : memref<8x128xf32, #tpu.memory_space<vmem>>, vector<8x128xf32>
    tpu.vector_store %arg7[%c0_10, %c0_11], %12 {strides = array<i32>} : memref<8x128xf32, #tpu.memory_space<vmem>>, vector<8x128xf32>,
    %c0_12 = arith.constant 0 : index
    %c0_13 = arith.constant 0 : index
    %c0_14 = arith.constant 0 : index
    %c1 = arith.constant 1 : index
    %c0_15 = arith.constant 0 : index
    %14 = vector.load %arg3[%c0_12, %c0_13, %c0_14, %c1, %c0_15] : memref<1x1x9x2x128xbf16, #tpu.memory_space<vmem>>, vector<1x1x8x1x128xbf16>
    %15 = vector.shape_cast %14 : vector<1x1x8x1x128xbf16> to vector<8x128xbf16>
    %c0_16 = arith.constant 0 : index
    %c0_17 = arith.constant 0 : index
    %16 = vector.load %arg7[%c0_16, %c0_17] : memref<8x128xf32, #tpu.memory_space<vmem>>, vector<8x128xf32>
    %c3_i32_18 = arith.constant 3 : i32
    %17 = arith.muli %arg2, %c3_i32_18 : i32
    %c1_i32 = arith.constant 1 : i32
    %18 = arith.addi %17, %c1_i32 : i32
    %19 = arith.index_cast %18 : i32 to index
    %c0_19 = arith.constant 0 : index
    %c0_20 = arith.constant 0 : index
    %20 = vector.load %arg4[%19, %c0_19, %c0_20] : memref<9x128x128xbf16, #tpu.memory_space<vmem>>, vector<1x128x128xbf16>
    %21 = vector.shape_cast %20 : vector<1x128x128xbf16> to vector<128x128xbf16>
    %cst_21 = arith.constant dense<0.000000e+00> : vector<8x128xf32>
    %22 = tpu.matmul %15, %21, %cst_21 {dimension_numbers = #tpu.dot_dimension_numbers<[1], [0], [0], [1], [0, 0, 1, 1], [], []>} : vector<8x128xbf16>, vector<128x128xbf16>, vector<8x128xf32> -> vector<8x128xf32>
    %23 = arith.addf %16, %22 : vector<8x128xf32>
    %c0_22 = arith.constant 0 : index
    %c0_23 = arith.constant 0 : index
    %24 = vector.load %arg7[%c0_22, %c0_23] : memref<8x128xf32, #tpu.memory_space<vmem>>, vector<8x128xf32>
    tpu.vector_store %arg7[%c0_22, %c0_23], %23 {strides = array<i32>} : memref<8x128xf32, #tpu.memory_space<vmem>>, vector<8x128xf32>,
    %c0_24 = arith.constant 0 : index
    %c0_25 = arith.constant 0 : index
    %c1_26 = arith.constant 1 : index
    %c0_27 = arith.constant 0 : index
    %c0_28 = arith.constant 0 : index
    %25 = vector.load %arg3[%c0_24, %c0_25, %c1_26, %c0_27, %c0_28] : memref<1x1x9x2x128xbf16, #tpu.memory_space<vmem>>, vector<1x1x8x1x128xbf16>
    %26 = vector.shape_cast %25 : vector<1x1x8x1x128xbf16> to vector<8x128xbf16>
    %c0_29 = arith.constant 0 : index
    %c0_30 = arith.constant 0 : index
    %27 = vector.load %arg7[%c0_29, %c0_30] : memref<8x128xf32, #tpu.memory_space<vmem>>, vector<8x128xf32>
    %c3_i32_31 = arith.constant 3 : i32
    %28 = arith.muli %arg2, %c3_i32_31 : i32
    %c2_i32 = arith.constant 2 : i32
    %29 = arith.addi %28, %c2_i32 : i32
    %30 = arith.index_cast %29 : i32 to index
    %c0_32 = arith.constant 0 : index
    %c0_33 = arith.constant 0 : index
    %31 = vector.load %arg4[%30, %c0_32, %c0_33] : memref<9x128x128xbf16, #tpu.memory_space<vmem>>, vector<1x128x128xbf16>
    %32 = vector.shape_cast %31 : vector<1x128x128xbf16> to vector<128x128xbf16>
    %cst_34 = arith.constant dense<0.000000e+00> : vector<8x128xf32>
    %33 = tpu.matmul %26, %32, %cst_34 {dimension_numbers = #tpu.dot_dimension_numbers<[1], [0], [0], [1], [0, 0, 1, 1], [], []>} : vector<8x128xbf16>, vector<128x128xbf16>, vector<8x128xf32> -> vector<8x128xf32>
    %34 = arith.addf %27, %33 : vector<8x128xf32>
    %c0_35 = arith.constant 0 : index
    %c0_36 = arith.constant 0 : index
    %35 = vector.load %arg7[%c0_35, %c0_36] : memref<8x128xf32, #tpu.memory_space<vmem>>, vector<8x128xf32>
    tpu.vector_store %arg7[%c0_35, %c0_36], %34 {strides = array<i32>} : memref<8x128xf32, #tpu.memory_space<vmem>>, vector<8x128xf32>,
    %c2_i32_37 = arith.constant 2 : i32
    %36 = arith.cmpi eq, %arg2, %c2_i32_37 : i32
    %37 = arith.extui %36 : i1 to i32
    %c0_i32_38 = arith.constant 0 : i32
    %38 = arith.cmpi ne, %37, %c0_i32_38 : i32
    scf.if %38 {
      %c0_39 = arith.constant 0 : index
      %c0_40 = arith.constant 0 : index
      %39 = vector.load %arg7[%c0_39, %c0_40] : memref<8x128xf32, #tpu.memory_space<vmem>>, vector<8x128xf32>
      %c0_41 = arith.constant 0 : index
      %c0_42 = arith.constant 0 : index
      %40 = vector.load %arg5[%c0_41, %c0_42] : memref<1x128xf32, #tpu.memory_space<vmem>>, vector<1x128xf32>
      %41 = vector.broadcast %40 : vector<1x128xf32> to vector<8x128xf32>
      %42 = arith.addf %39, %41 : vector<8x128xf32>
      %cst_43 = arith.constant 0.000000e+00 : f32
      %43 = vector.broadcast %cst_43 : f32 to vector<8x128xf32>
      %44 = arith.maximumf %42, %43 : vector<8x128xf32>
      %45 = arith.truncf %44 : vector<8x128xf32> to vector<8x128xbf16>
      %c0_44 = arith.constant 0 : index
      %c0_45 = arith.constant 0 : index
      %c0_46 = arith.constant 0 : index
      %c0_47 = arith.constant 0 : index
      %46 = vector.load %arg6[%c0_44, %c0_45, %c0_46, %c0_47] : memref<1x1x8x128xbf16, #tpu.memory_space<vmem>>, vector<1x1x8x128xbf16>
      %47 = vector.shape_cast %46 : vector<1x1x8x128xbf16> to vector<8x128xbf16>
      %48 = vector.shape_cast %45 : vector<8x128xbf16> to vector<1x1x8x128xbf16>
      tpu.vector_store %arg6[%c0_44, %c0_45, %c0_46, %c0_47], %48 {strides = array<i32>} : memref<1x1x8x128xbf16, #tpu.memory_space<vmem>>, vector<1x1x8x128xbf16>,
    } else {
    }
    return
  }
  func.func @transform_0(%arg0: i32, %arg1: i32, %arg2: i32) -> (i32, i32, i32, i32, i32) {
    %c2_i32 = arith.constant 2 : i32
    %0 = arith.muli %arg1, %c2_i32 : i32
    %1 = arith.addi %0, %arg2 : i32
    %c0_i32 = arith.constant 0 : i32
    %c0_i32_0 = arith.constant 0 : i32
    %c0_i32_1 = arith.constant 0 : i32
    %c0_i32_2 = arith.constant 0 : i32
    return %arg0, %1, %c0_i32, %c0_i32_0, %c0_i32_1 : i32, i32, i32, i32, i32
  }
  func.func @transform_1(%arg0: i32, %arg1: i32, %arg2: i32) -> (i32, i32, i32) {
    %c0_i32 = arith.constant 0 : i32
    %c0_i32_0 = arith.constant 0 : i32
    %c0_i32_1 = arith.constant 0 : i32
    %c0_i32_2 = arith.constant 0 : i32
    return %c0_i32, %c0_i32_0, %c0_i32_1 : i32, i32, i32
  }
  func.func @transform_2(%arg0: i32, %arg1: i32, %arg2: i32) -> (i32, i32) {
    %c0_i32 = arith.constant 0 : i32
    %c0_i32_0 = arith.constant 0 : i32
    %c0_i32_1 = arith.constant 0 : i32
    return %c0_i32, %c0_i32_0 : i32, i32
  }
  func.func @transform_3(%arg0: i32, %arg1: i32, %arg2: i32) -> (i32, i32, i32, i32) {
    %c0_i32 = arith.constant 0 : i32
    %c0_i32_0 = arith.constant 0 : i32
    %c0_i32_1 = arith.constant 0 : i32
    return %arg0, %arg1, %c0_i32, %c0_i32_0 : i32, i32, i32, i32
  }
}

module attributes {stable_mosaic.version = 11 : i64} {
  func.func @_conv3_proj_kernel(%arg0: i32, %arg1: i32, %arg2: memref<1x1x8x128xbf16, #tpu.memory_space<vmem>>, %arg3: memref<128x16xbf16, #tpu.memory_space<vmem>>, %arg4: memref<1x1x8x2x4xf32, #tpu.memory_space<vmem>>, %arg5: memref<4x16xbf16, #tpu.memory_space<vmem>>, %arg6: memref<1x16xf32, #tpu.memory_space<vmem>>, %arg7: memref<1x1x8x16xf32, #tpu.memory_space<vmem>>) attributes {dimension_semantics = [#tpu.dimension_semantics<parallel>, #tpu.dimension_semantics<parallel>], iteration_bounds = array<i64: 2, 8>, scalar_prefetch = 0 : i64, scratch_operands = 0 : i64, tpu.core_type = #tpu.core_type<tc>, window_params = [{transform_indices = @transform_0, window_bounds = array<i64: 1, 1, 8, 128>}, {pipeline_mode = #tpu.pipeline_mode<synchronous>, transform_indices = @transform_1, window_bounds = array<i64: 128, 16>}, {transform_indices = @transform_2, window_bounds = array<i64: 1, 1, 8, 2, 4>}, {pipeline_mode = #tpu.pipeline_mode<synchronous>, transform_indices = @transform_3, window_bounds = array<i64: 4, 16>}, {pipeline_mode = #tpu.pipeline_mode<synchronous>, transform_indices = @transform_4, window_bounds = array<i64: 1, 16>}, {transform_indices = @transform_5, window_bounds = array<i64: 1, 1, 8, 16>}]} {
    %c0 = arith.constant 0 : index
    %c0_0 = arith.constant 0 : index
    %c0_1 = arith.constant 0 : index
    %c0_2 = arith.constant 0 : index
    %0 = vector.load %arg2[%c0, %c0_0, %c0_1, %c0_2] : memref<1x1x8x128xbf16, #tpu.memory_space<vmem>>, vector<1x1x8x128xbf16>
    %1 = vector.shape_cast %0 : vector<1x1x8x128xbf16> to vector<8x128xbf16>
    %c0_3 = arith.constant 0 : index
    %c0_4 = arith.constant 0 : index
    %2 = vector.load %arg3[%c0_3, %c0_4] : memref<128x16xbf16, #tpu.memory_space<vmem>>, vector<128x16xbf16>
    %cst = arith.constant dense<0.000000e+00> : vector<8x16xf32>
    %3 = tpu.matmul %1, %2, %cst {dimension_numbers = #tpu.dot_dimension_numbers<[1], [0], [0], [1], [0, 0, 1, 1], [], []>} : vector<8x128xbf16>, vector<128x16xbf16>, vector<8x16xf32> -> vector<8x16xf32>
    %c0_5 = arith.constant 0 : index
    %c0_6 = arith.constant 0 : index
    %c0_7 = arith.constant 0 : index
    %c0_8 = arith.constant 0 : index
    %c0_9 = arith.constant 0 : index
    %4 = vector.load %arg4[%c0_5, %c0_6, %c0_7, %c0_8, %c0_9] : memref<1x1x8x2x4xf32, #tpu.memory_space<vmem>>, vector<1x1x8x1x4xf32>
    %5 = vector.shape_cast %4 : vector<1x1x8x1x4xf32> to vector<8x4xf32>
    %6 = arith.truncf %5 : vector<8x4xf32> to vector<8x4xbf16>
    %c0_10 = arith.constant 0 : index
    %c0_11 = arith.constant 0 : index
    %7 = vector.load %arg5[%c0_10, %c0_11] : memref<4x16xbf16, #tpu.memory_space<vmem>>, vector<4x16xbf16>
    %cst_12 = arith.constant dense<0.000000e+00> : vector<8x16xf32>
    %8 = tpu.matmul %6, %7, %cst_12 {dimension_numbers = #tpu.dot_dimension_numbers<[1], [0], [0], [1], [0, 0, 1, 1], [], []>} : vector<8x4xbf16>, vector<4x16xbf16>, vector<8x16xf32> -> vector<8x16xf32>
    %9 = arith.addf %3, %8 : vector<8x16xf32>
    %c0_13 = arith.constant 0 : index
    %c0_14 = arith.constant 0 : index
    %10 = vector.load %arg6[%c0_13, %c0_14] : memref<1x16xf32, #tpu.memory_space<vmem>>, vector<1x16xf32>
    %11 = vector.broadcast %10 : vector<1x16xf32> to vector<8x16xf32>
    %12 = arith.addf %9, %11 : vector<8x16xf32>
    %cst_15 = arith.constant 0.000000e+00 : f32
    %13 = vector.broadcast %cst_15 : f32 to vector<8x16xf32>
    %14 = arith.maximumf %12, %13 : vector<8x16xf32>
    %c0_16 = arith.constant 0 : index
    %c0_17 = arith.constant 0 : index
    %c0_18 = arith.constant 0 : index
    %c0_19 = arith.constant 0 : index
    %15 = vector.load %arg7[%c0_16, %c0_17, %c0_18, %c0_19] : memref<1x1x8x16xf32, #tpu.memory_space<vmem>>, vector<1x1x8x16xf32>
    %16 = vector.shape_cast %15 : vector<1x1x8x16xf32> to vector<8x16xf32>
    %17 = vector.shape_cast %14 : vector<8x16xf32> to vector<1x1x8x16xf32>
    tpu.vector_store %arg7[%c0_16, %c0_17, %c0_18, %c0_19], %17 {strides = array<i32>} : memref<1x1x8x16xf32, #tpu.memory_space<vmem>>, vector<1x1x8x16xf32>,
    return
  }
  func.func @transform_0(%arg0: i32, %arg1: i32) -> (i32, i32, i32, i32) {
    %c0_i32 = arith.constant 0 : i32
    %c0_i32_0 = arith.constant 0 : i32
    %c0_i32_1 = arith.constant 0 : i32
    return %arg0, %arg1, %c0_i32, %c0_i32_0 : i32, i32, i32, i32
  }
  func.func @transform_1(%arg0: i32, %arg1: i32) -> (i32, i32) {
    %c0_i32 = arith.constant 0 : i32
    %c0_i32_0 = arith.constant 0 : i32
    %c0_i32_1 = arith.constant 0 : i32
    return %c0_i32, %c0_i32_0 : i32, i32
  }
  func.func @transform_2(%arg0: i32, %arg1: i32) -> (i32, i32, i32, i32, i32) {
    %c2_i32 = arith.constant 2 : i32
    %0 = arith.muli %arg1, %c2_i32 : i32
    %c0_i32 = arith.constant 0 : i32
    %c0_i32_0 = arith.constant 0 : i32
    %c0_i32_1 = arith.constant 0 : i32
    %c0_i32_2 = arith.constant 0 : i32
    return %arg0, %0, %c0_i32, %c0_i32_0, %c0_i32_1 : i32, i32, i32, i32, i32
  }
  func.func @transform_3(%arg0: i32, %arg1: i32) -> (i32, i32) {
    %c0_i32 = arith.constant 0 : i32
    %c0_i32_0 = arith.constant 0 : i32
    %c0_i32_1 = arith.constant 0 : i32
    return %c0_i32, %c0_i32_0 : i32, i32
  }
  func.func @transform_4(%arg0: i32, %arg1: i32) -> (i32, i32) {
    %c0_i32 = arith.constant 0 : i32
    %c0_i32_0 = arith.constant 0 : i32
    %c0_i32_1 = arith.constant 0 : i32
    return %c0_i32, %c0_i32_0 : i32, i32
  }
  func.func @transform_5(%arg0: i32, %arg1: i32) -> (i32, i32, i32, i32) {
    %c0_i32 = arith.constant 0 : i32
    %c0_i32_0 = arith.constant 0 : i32
    %c0_i32_1 = arith.constant 0 : i32
    return %arg0, %arg1, %c0_i32, %c0_i32_0 : i32, i32, i32, i32
  }
}

</mosaic_0001>

<llo_original>
// kernel: bottleneck_forward.3
$region0: #{bottleneck_forward.3}
  #allocation0 [shape = 'u32[]', space=smem, size = 0x4, offset = 0x4, fixed_abs, tag = 'smem constant byte address 0x4 - core index']
  #allocation1 [shape = 'u32[72,128]{1,0:T(1,128)}', space=vmem, size = 0x9000, scoped, tag = 'internal scratch']
  %s0 = inlined_call_operand.vmem [shape: f32[512,4], index: 0, kind: input, shape index: {}]
  %s1 = inlined_call_operand.vmem [shape: bf16[4,128], index: 1, kind: input, shape index: {}]
  %s2 = inlined_call_operand.vmem [shape: f32[1,128], index: 2, kind: input, shape index: {}]
  %s3 = inlined_call_operand.vmem [shape: bf16[512,128], index: 3, kind: output, shape index: {}]
  %s4 = sld [smem:[#allocation0]]
  $region45: #{bottleneck_forward.3} parent=0
    _
  %s6 = ssub.s32 1, %s4
  %s7 = scalar_select 0, %s6, %s4
  loop: start=0, step=1, limit=4
  $region2: #{bottleneck_forward.3} parent=0 // loop_pre_header
    _
  $region3: #{bottleneck_forward.3} parent=0 // loop_header
    %s9 = sphi 0, %s13
    %p10 = scmp.ge.s32.totalorder %s9, 4
    %s19 = sphi 0, %s21
    %s22 = sphi 0, %s19
    %s23 = sphi 0, %s22
    %s39 = sphi 0, %s23
    %s43 = sphi 0, %s43
    %s45 = sphi 0, %s43
    %s46 = sphi 0, %s45
    %s60 = sphi 0, %s46
    %s64 = sphi 0, %s64
    %s66 = sphi 0, %s64
    %s67 = sphi 0, %s66
    %s81 = sphi 0, %s67
    %s87 = sphi 0, %s89
    %s90 = sphi 0, %s87
    %s91 = sphi 0, %s90
    %s107 = sphi 0, %s91
  $region4: #{bottleneck_forward.3} parent=0 // loop_header_branch
    %12 = sbr.rel (%p10) target = $region8
  $region5: #{bottleneck_forward.3} parent=0 // loop_body
    %s14 = ssub.s32 %s9, 1
    %s15 = ssub.s32 %s9, 2
    %s16 = sadd.s32 %s9, 1
    %s17 = ssub.s32 %s9, %s16
    %p18 = scmp.eq.s32.totalorder %s17, 0
    %s20 = sadd.s32 %s19, 1
    %s21 = scalar_select %p18, %s19, %s20
    %p24 = pneg %p18
    %p25 = scmp.eq.s32.totalorder %s9, 1
    %p26 = por %p24, %p25
    %p27 = scmp.ne.s32.totalorder %s19, %s22
    %p28 = scmp.eq.s32.totalorder %s9, 0
    %p29 = por %p27, %p28
    %p30 = scmp.ne.s32.totalorder %s19, %s22
    %p31 = scmp.eq.s32.totalorder %s14, 1
    %p32 = por %p30, %p31
    %p33 = scmp.ne.s32.totalorder %s22, %s23
    %p34 = scmp.eq.s32.totalorder %s14, 0
    %p35 = por %p33, %p34
    %p36 = scmp.ne.s32.totalorder %s22, %s23
    %p37 = scmp.eq.s32.totalorder %s15, 1
    %p38 = por %p36, %p37
    %p40 = scmp.ne.s32.totalorder %s23, %s39
    %p41 = scmp.eq.s32.totalorder %s15, 0
    %p42 = por %p40, %p41
    %s44 = sadd.s32 %s43, 1
    %p47 = scmp.eq.s32.totalorder %s9, 1
    %p48 = scmp.ne.s32.totalorder %s43, %s45
    %p49 = scmp.eq.s32.totalorder %s9, 0
    %p50 = por %p48, %p49
    %p51 = scmp.ne.s32.totalorder %s43, %s45
    %p52 = scmp.eq.s32.totalorder %s14, 1
    %p53 = por %p51, %p52
    %p54 = scmp.ne.s32.totalorder %s45, %s46
    %p55 = scmp.eq.s32.totalorder %s14, 0
    %p56 = por %p54, %p55
    %p57 = scmp.ne.s32.totalorder %s45, %s46
    %p58 = scmp.eq.s32.totalorder %s15, 1
    %p59 = por %p57, %p58
    %p61 = scmp.ne.s32.totalorder %s46, %s60
    %p62 = scmp.eq.s32.totalorder %s15, 0
    %p63 = por %p61, %p62
    %s65 = sadd.s32 %s64, 1
    %p68 = scmp.eq.s32.totalorder %s9, 1
    %p69 = scmp.ne.s32.totalorder %s64, %s66
    %p70 = scmp.eq.s32.totalorder %s9, 0
    %p71 = por %p69, %p70
    %p72 = scmp.ne.s32.totalorder %s64, %s66
    %p73 = scmp.eq.s32.totalorder %s14, 1
    %p74 = por %p72, %p73
    %p75 = scmp.ne.s32.totalorder %s66, %s67
    %p76 = scmp.eq.s32.totalorder %s14, 0
    %p77 = por %p75, %p76
    %p78 = scmp.ne.s32.totalorder %s66, %s67
    %p79 = scmp.eq.s32.totalorder %s15, 1
    %p80 = por %p78, %p79
    %p82 = scmp.ne.s32.totalorder %s67, %s81
    %p83 = scmp.eq.s32.totalorder %s15, 0
    %p84 = por %p82, %p83
    %s85 = ssub.s32 %s9, %s16
    %p86 = scmp.eq.s32.totalorder %s85, 0
    %s88 = sadd.s32 %s87, 1
    %s89 = scalar_select %p86, %s87, %s88
    %p92 = pneg %p86
    %p93 = scmp.eq.s32.totalorder %s9, 1
    %p94 = por %p92, %p93
    %p95 = scmp.ne.s32.totalorder %s87, %s90
    %p96 = scmp.eq.s32.totalorder %s9, 0
    %p97 = por %p95, %p96
    %p98 = scmp.ne.s32.totalorder %s87, %s90
    %p99 = scmp.eq.s32.totalorder %s14, 1
    %p100 = por %p98, %p99
    %p101 = scmp.ne.s32.totalorder %s90, %s91
    %p102 = scmp.eq.s32.totalorder %s14, 0
    %p103 = por %p101, %p102
    %p104 = scmp.ne.s32.totalorder %s90, %s91
    %p105 = scmp.eq.s32.totalorder %s15, 1
    %p106 = por %p104, %p105
    %p108 = scmp.ne.s32.totalorder %s91, %s107
    %p109 = scmp.eq.s32.totalorder %s15, 0
    %p110 = por %p108, %p109
    %p111 = scmp.le.s32.totalorder 1, %s9
    %p112 = scmp.lt.s32.totalorder %s9, 3
    %p113 = pnand %p111, %p112
    %p114 = pneg %p113
    // Predicated region
    $region9: #{bottleneck_forward.3} parent=5 // pred_check
      _
    $region10: #{bottleneck_forward.3} parent=5 // pred_check_branch
      %116 = sbr.rel (%p113) target = $region12
    $region11: #{bottleneck_forward.3} parent=5 // pred_region
      %s117 = ssub.s32 %s9, 1
      // Predicated region
      $region13: #{bottleneck_forward.3} parent=11 // pred_check
        %p118 = pneg %p56
      $region14: #{bottleneck_forward.3} parent=11 // pred_check_branch
        %120 = sbr.rel (%p118) target = $region16
      $region15: #{bottleneck_forward.3} parent=11 // pred_region
        _
      $region16: #{bottleneck_forward.3} parent=11 // pred_fallthru
        _
      // Predicated region
      $region17: #{bottleneck_forward.3} parent=11 // pred_check
        %p121 = pneg %p77
      $region18: #{bottleneck_forward.3} parent=11 // pred_check_branch
        %123 = sbr.rel (%p121) target = $region20
      $region19: #{bottleneck_forward.3} parent=11 // pred_region
        _
      $region20: #{bottleneck_forward.3} parent=11 // pred_fallthru
        _
    $region12: #{bottleneck_forward.3} parent=5 // pred_fallthru
      _
    %p124 = scmp.lt.s32.totalorder %s9, 2
    // Predicated region
    $region21: #{bottleneck_forward.3} parent=5 // pred_check
      %p125 = pneg %p124
    $region22: #{bottleneck_forward.3} parent=5 // pred_check_branch
      %127 = sbr.rel (%p125) target = $region24
    $region23: #{bottleneck_forward.3} parent=5 // pred_region
      // Predicated region
      $region25: #{bottleneck_forward.3} parent=23 // pred_check
        %p128 = pneg %p29
      $region26: #{bottleneck_forward.3} parent=23 // pred_check_branch
        %130 = sbr.rel (%p128) target = $region28
      $region27: #{bottleneck_forward.3} parent=23 // pred_region
        %s131 = smul.u32 32, %s9
        %p132 = scmp.lt.s32.totalorder %s131, 63
        %s133 = scalar_select %p132, %s131, 63
        %s134 = smul.addr %s133, 8
        %s135 = scalar_lea.vmem %s0, %s134
        %s136 = smul.u32 32, %s9
      $region28: #{bottleneck_forward.3} parent=23 // pred_fallthru
        _
    $region24: #{bottleneck_forward.3} parent=5 // pred_fallthru
      _
    %p137 = scmp.le.s32.totalorder 1, %s9
    %p138 = scmp.lt.s32.totalorder %s9, 3
    %p139 = pnand %p137, %p138
    %p140 = pneg %p139
    // Predicated region
    $region29: #{bottleneck_forward.3} parent=5 // pred_check
      _
    $region30: #{bottleneck_forward.3} parent=5 // pred_check_branch
      %142 = sbr.rel (%p139) target = $region32
    $region31: #{bottleneck_forward.3} parent=5 // pred_region
      %s143 = ssub.s32 %s9, 1
      %s144 = smul.u32 32, %s14
      %p145 = scmp.lt.s32.totalorder %s144, 63
      %s146 = scalar_select %p145, %s144, 63
      %s147 = smul.addr %s146, 8
      %s148 = scalar_lea.vmem %s0, %s147
      %p149 = pneg %p35
      %p150 = pneg %p32
      %p151 = pneg %p56
      %p152 = pneg %p53
      %p153 = pneg %p77
      %p154 = pneg %p74
      %p155 = pneg %p103
      %p156 = pneg %p100
      %s157 = smul.u32 32, %s14
      %p158 = scmp.lt.s32.totalorder %s157, 63
      %s159 = scalar_select %p158, %s157, 63
      %s160 = smul.addr %s159, 4
      %s161 = scalar_lea.vmem %s3, %s160
      %s162 = smul.u32 32, %s14
      %p163 = scmp.lt.s32.totalorder %s162, 63
      %s164 = scalar_select %p163, %s162, 63
      %s165 = smul.addr %s164, 8
      %s166 = scalar_lea.vmem %s0, %s165
      %s167 = smul.u32 32, %s14
      %s168 = smul.u32 32, %s14
      %p169 = scmp.lt.s32.totalorder %s168, 63
      %s170 = scalar_select %p169, %s168, 63
      %s171 = smul.addr %s170, 4
      %s172 = scalar_lea.vmem %s3, %s171
      %s173 = smul.u32 32, %s14
      %v175 = vld [vmem:[%s166] sm:$0xff]
      %v176 = vld [vmem:[%s166 + $0x8] sm:$0xff]
      %v177 = vld [vmem:[%s166 + $0x10] sm:$0xff]
      %v178 = vld [vmem:[%s166 + $0x18] sm:$0xff]
      %v179 = vld [vmem:[%s166 + $0x20] sm:$0xff]
      %v180 = vld [vmem:[%s166 + $0x28] sm:$0xff]
      %v181 = vld [vmem:[%s166 + $0x30] sm:$0xff]
      %v182 = vld [vmem:[%s166 + $0x38] sm:$0xff]
      %v183 = vld [vmem:[%s166 + $0x40] sm:$0xff]
      %v184 = vld [vmem:[%s166 + $0x48] sm:$0xff]
      %v185 = vld [vmem:[%s166 + $0x50] sm:$0xff]
      %v186 = vld [vmem:[%s166 + $0x58] sm:$0xff]
      %v187 = vld [vmem:[%s166 + $0x60] sm:$0xff]
      %v188 = vld [vmem:[%s166 + $0x68] sm:$0xff]
      %v189 = vld [vmem:[%s166 + $0x70] sm:$0xff]
      %v190 = vld [vmem:[%s166 + $0x78] sm:$0xff]
      %v191 = vld [vmem:[%s166 + $0x80] sm:$0xff]
      %v192 = vld [vmem:[%s166 + $0x88] sm:$0xff]
      %v193 = vld [vmem:[%s166 + $0x90] sm:$0xff]
      %v194 = vld [vmem:[%s166 + $0x98] sm:$0xff]
      %v195 = vld [vmem:[%s166 + $0xa0] sm:$0xff]
      %v196 = vld [vmem:[%s166 + $0xa8] sm:$0xff]
      %v197 = vld [vmem:[%s166 + $0xb0] sm:$0xff]
      %v198 = vld [vmem:[%s166 + $0xb8] sm:$0xff]
      %v199 = vld [vmem:[%s166 + $0xc0] sm:$0xff]
      %v200 = vld [vmem:[%s166 + $0xc8] sm:$0xff]
      %v201 = vld [vmem:[%s166 + $0xd0] sm:$0xff]
      %v202 = vld [vmem:[%s166 + $0xd8] sm:$0xff]
      %v203 = vld [vmem:[%s166 + $0xe0] sm:$0xff]
      %v204 = vld [vmem:[%s166 + $0xe8] sm:$0xff]
      %v205 = vld [vmem:[%s166 + $0xf0] sm:$0xff]
      %v206 = vld [vmem:[%s166 + $0xf8] sm:$0xff]
      %v207 = vpack.c.bf16 %v176, %v175
      %v208 = vpack.c.bf16 %v178, %v177
      %v209 = vpack.c.bf16 %v180, %v179
      %v210 = vpack.c.bf16 %v182, %v181
      %v211 = vpack.c.bf16 %v184, %v183
      %v212 = vpack.c.bf16 %v186, %v185
      %v213 = vpack.c.bf16 %v188, %v187
      %v214 = vpack.c.bf16 %v190, %v189
      %v215 = vpack.c.bf16 %v192, %v191
      %v216 = vpack.c.bf16 %v194, %v193
      %v217 = vpack.c.bf16 %v196, %v195
      %v218 = vpack.c.bf16 %v198, %v197
      %v219 = vpack.c.bf16 %v200, %v199
      %v220 = vpack.c.bf16 %v202, %v201
      %v221 = vpack.c.bf16 %v204, %v203
      %v222 = vpack.c.bf16 %v206, %v205
      %v223 = vld [vmem:[%s1] sm:$0x3]
      %v224 = vld [vmem:[%s2] sm:$0x1]
      %v226 = vperm.slane %v224, 0
      %vm228 = vcmask 31744
      %v230 = vsel %vm228, %v207, 0
      %v233 = vsel %vm228, %v208, 0
      %v236 = vsel %vm228, %v209, 0
      %v239 = vsel %vm228, %v210, 0
      %v242 = vsel %vm228, %v211, 0
      %v245 = vsel %vm228, %v212, 0
      %v248 = vsel %vm228, %v213, 0
      %v251 = vsel %vm228, %v214, 0
      %v254 = vsel %vm228, %v215, 0
      %v257 = vsel %vm228, %v216, 0
      %v260 = vsel %vm228, %v217, 0
      %v263 = vsel %vm228, %v218, 0
      %v266 = vsel %vm228, %v219, 0
      %v269 = vsel %vm228, %v220, 0
      %v272 = vsel %vm228, %v221, 0
      %v275 = vsel %vm228, %v222, 0
      %vm277 = vcmask 1041408
      %v279 = vsel %vm277, %v223, 0
      %281 = vmatpush.bf16.msra.mxu0 0
      %282 = vmatpush.bf16.msra.mxu0 0
      %283 = vmatpush.bf16.msra.mxu0 0
      %284 = vmatpush.bf16.msra.mxu0 0
      %285 = vmatpush.bf16.msra.mxu0 0
      %286 = vmatpush.bf16.msra.mxu0 0
      %287 = vmatpush.bf16.msra.mxu0 0
      %288 = vmatpush.bf16.msra.mxu0 %v279
      %289 = vmatmul.bf16.gmra.mxu0 %v230
      %v290 = vpop.f32.mrf.mxu0
      %v291 = vadd.f32 %v226, %v290
      %v292 = vpop.f32.mrf.mxu0
      %v293 = vadd.f32 %v226, %v292
      %294 = vmatmul.bf16.gmra.mxu0 %v233
      %v295 = vpop.f32.mrf.mxu0
      %v296 = vadd.f32 %v226, %v295
      %v297 = vpop.f32.mrf.mxu0
      %v298 = vadd.f32 %v226, %v297
      %299 = vmatmul.bf16.gmra.mxu0 %v236
      %v300 = vpop.f32.mrf.mxu0
      %v301 = vadd.f32 %v226, %v300
      %v302 = vpop.f32.mrf.mxu0
      %v303 = vadd.f32 %v226, %v302
      %304 = vmatmul.bf16.gmra.mxu0 %v239
      %v305 = vpop.f32.mrf.mxu0
      %v306 = vadd.f32 %v226, %v305
      %v307 = vpop.f32.mrf.mxu0
      %v308 = vadd.f32 %v226, %v307
      %309 = vmatmul.bf16.gmra.mxu0 %v242
      %v310 = vpop.f32.mrf.mxu0
      %v311 = vadd.f32 %v226, %v310
      %v312 = vpop.f32.mrf.mxu0
      %v313 = vadd.f32 %v226, %v312
      %314 = vmatmul.bf16.gmra.mxu0 %v245
      %v315 = vpop.f32.mrf.mxu0
      %v316 = vadd.f32 %v226, %v315
      %v317 = vpop.f32.mrf.mxu0
      %v318 = vadd.f32 %v226, %v317
      %319 = vmatmul.bf16.gmra.mxu0 %v248
      %v320 = vpop.f32.mrf.mxu0
      %v321 = vadd.f32 %v226, %v320
      %v322 = vpop.f32.mrf.mxu0
      %v323 = vadd.f32 %v226, %v322
      %324 = vmatmul.bf16.gmra.mxu0 %v251
      %v325 = vpop.f32.mrf.mxu0
      %v326 = vadd.f32 %v226, %v325
      %v327 = vpop.f32.mrf.mxu0
      %v328 = vadd.f32 %v226, %v327
      %329 = vmatmul.bf16.gmra.mxu0 %v254
      %v330 = vpop.f32.mrf.mxu0
      %v331 = vadd.f32 %v226, %v330
      %v332 = vpop.f32.mrf.mxu0
      %v333 = vadd.f32 %v226, %v332
      %334 = vmatmul.bf16.gmra.mxu0 %v257
      %v335 = vpop.f32.mrf.mxu0
      %v336 = vadd.f32 %v226, %v335
      %v337 = vpop.f32.mrf.mxu0
      %v338 = vadd.f32 %v226, %v337
      %339 = vmatmul.bf16.gmra.mxu0 %v260
      %v340 = vpop.f32.mrf.mxu0
      %v341 = vadd.f32 %v226, %v340
      %v342 = vpop.f32.mrf.mxu0
      %v343 = vadd.f32 %v226, %v342
      %344 = vmatmul.bf16.gmra.mxu0 %v263
      %v345 = vpop.f32.mrf.mxu0
      %v346 = vadd.f32 %v226, %v345
      %v347 = vpop.f32.mrf.mxu0
      %v348 = vadd.f32 %v226, %v347
      %349 = vmatmul.bf16.gmra.mxu0 %v266
      %v350 = vpop.f32.mrf.mxu0
      %v351 = vadd.f32 %v226, %v350
      %v352 = vpop.f32.mrf.mxu0
      %v353 = vadd.f32 %v226, %v352
      %354 = vmatmul.bf16.gmra.mxu0 %v269
      %v355 = vpop.f32.mrf.mxu0
      %v356 = vadd.f32 %v226, %v355
      %v357 = vpop.f32.mrf.mxu0
      %v358 = vadd.f32 %v226, %v357
      %359 = vmatmul.bf16.gmra.mxu0 %v272
      %v360 = vpop.f32.mrf.mxu0
      %v361 = vadd.f32 %v226, %v360
      %v362 = vpop.f32.mrf.mxu0
      %v363 = vadd.f32 %v226, %v362
      %364 = vmatmul.bf16.gmra.mxu0 %v275
      %v365 = vpop.f32.mrf.mxu0
      %v366 = vadd.f32 %v226, %v365
      %v367 = vpop.f32.mrf.mxu0
      %v368 = vadd.f32 %v226, %v367
      %369 = vdwg.mxu0
      %v370 = vmax.f32 %v291, 0.0
      %v371 = vmax.f32 %v293, 0.0
      %v372 = vmax.f32 %v296, 0.0
      %v373 = vmax.f32 %v298, 0.0
      %v374 = vmax.f32 %v301, 0.0
      %v375 = vmax.f32 %v303, 0.0
      %v376 = vmax.f32 %v306, 0.0
      %v377 = vmax.f32 %v308, 0.0
      %v378 = vmax.f32 %v311, 0.0
      %v379 = vmax.f32 %v313, 0.0
      %v380 = vmax.f32 %v316, 0.0
      %v381 = vmax.f32 %v318, 0.0
      %v382 = vmax.f32 %v321, 0.0
      %v383 = vmax.f32 %v323, 0.0
      %v384 = vmax.f32 %v326, 0.0
      %v385 = vmax.f32 %v328, 0.0
      %v386 = vmax.f32 %v331, 0.0
      %v387 = vmax.f32 %v333, 0.0
      %v388 = vmax.f32 %v336, 0.0
      %v389 = vmax.f32 %v338, 0.0
      %v390 = vmax.f32 %v341, 0.0
      %v391 = vmax.f32 %v343, 0.0
      %v392 = vmax.f32 %v346, 0.0
      %v393 = vmax.f32 %v348, 0.0
      %v394 = vmax.f32 %v351, 0.0
      %v395 = vmax.f32 %v353, 0.0
      %v396 = vmax.f32 %v356, 0.0
      %v397 = vmax.f32 %v358, 0.0
      %v398 = vmax.f32 %v361, 0.0
      %v399 = vmax.f32 %v363, 0.0
      %v400 = vmax.f32 %v366, 0.0
      %v401 = vmax.f32 %v368, 0.0
      %v402 = vpack.c.bf16 %v370, %v370
      %v403 = vpack.c.bf16 %v371, %v371
      %v404 = vpack.c.bf16 %v372, %v372
      %v405 = vpack.c.bf16 %v373, %v373
      %v406 = vpack.c.bf16 %v374, %v374
      %v407 = vpack.c.bf16 %v375, %v375
      %v408 = vpack.c.bf16 %v376, %v376
      %v409 = vpack.c.bf16 %v377, %v377
      %v410 = vpack.c.bf16 %v378, %v378
      %v411 = vpack.c.bf16 %v379, %v379
      %v412 = vpack.c.bf16 %v380, %v380
      %v413 = vpack.c.bf16 %v381, %v381
      %v414 = vpack.c.bf16 %v382, %v382
      %v415 = vpack.c.bf16 %v383, %v383
      %v416 = vpack.c.bf16 %v384, %v384
      %v417 = vpack.c.bf16 %v385, %v385
      %v418 = vpack.c.bf16 %v386, %v386
      %v419 = vpack.c.bf16 %v387, %v387
      %v420 = vpack.c.bf16 %v388, %v388
      %v421 = vpack.c.bf16 %v389, %v389
      %v422 = vpack.c.bf16 %v390, %v390
      %v423 = vpack.c.bf16 %v391, %v391
      %v424 = vpack.c.bf16 %v392, %v392
      %v425 = vpack.c.bf16 %v393, %v393
      %v426 = vpack.c.bf16 %v394, %v394
      %v427 = vpack.c.bf16 %v395, %v395
      %v428 = vpack.c.bf16 %v396, %v396
      %v429 = vpack.c.bf16 %v397, %v397
      %v430 = vpack.c.bf16 %v398, %v398
      %v431 = vpack.c.bf16 %v399, %v399
      %v432 = vpack.c.bf16 %v400, %v400
      %v433 = vpack.c.bf16 %v401, %v401
      %434 = vst [vmem:[%s172] sm:$0xf] %v402
      %435 = vst [vmem:[%s172 + $0x4] sm:$0xf] %v403
      %436 = vst [vmem:[%s172 + $0x8] sm:$0xf] %v404
      %437 = vst [vmem:[%s172 + $0xc] sm:$0xf] %v405
      %438 = vst [vmem:[%s172 + $0x10] sm:$0xf] %v406
      %439 = vst [vmem:[%s172 + $0x14] sm:$0xf] %v407
      %440 = vst [vmem:[%s172 + $0x18] sm:$0xf] %v408
      %441 = vst [vmem:[%s172 + $0x1c] sm:$0xf] %v409
      %442 = vst [vmem:[%s172 + $0x20] sm:$0xf] %v410
      %443 = vst [vmem:[%s172 + $0x24] sm:$0xf] %v411
      %444 = vst [vmem:[%s172 + $0x28] sm:$0xf] %v412
      %445 = vst [vmem:[%s172 + $0x2c] sm:$0xf] %v413
      %446 = vst [vmem:[%s172 + $0x30] sm:$0xf] %v414
      %447 = vst [vmem:[%s172 + $0x34] sm:$0xf] %v415
      %448 = vst [vmem:[%s172 + $0x38] sm:$0xf] %v416
      %449 = vst [vmem:[%s172 + $0x3c] sm:$0xf] %v417
      %450 = vst [vmem:[%s172 + $0x40] sm:$0xf] %v418
      %451 = vst [vmem:[%s172 + $0x44] sm:$0xf] %v419
      %452 = vst [vmem:[%s172 + $0x48] sm:$0xf] %v420
      %453 = vst [vmem:[%s172 + $0x4c] sm:$0xf] %v421
      %454 = vst [vmem:[%s172 + $0x50] sm:$0xf] %v422
      %455 = vst [vmem:[%s172 + $0x54] sm:$0xf] %v423
      %456 = vst [vmem:[%s172 + $0x58] sm:$0xf] %v424
      %457 = vst [vmem:[%s172 + $0x5c] sm:$0xf] %v425
      %458 = vst [vmem:[%s172 + $0x60] sm:$0xf] %v426
      %459 = vst [vmem:[%s172 + $0x64] sm:$0xf] %v427
      %460 = vst [vmem:[%s172 + $0x68] sm:$0xf] %v428
      %461 = vst [vmem:[%s172 + $0x6c] sm:$0xf] %v429
      %462 = vst [vmem:[%s172 + $0x70] sm:$0xf] %v430
      %463 = vst [vmem:[%s172 + $0x74] sm:$0xf] %v431
      %464 = vst [vmem:[%s172 + $0x78] sm:$0xf] %v432
      %465 = vst [vmem:[%s172 + $0x7c] sm:$0xf] %v433
      %s466 = smul.u32 32, %s14
      %p467 = scmp.lt.s32.totalorder %s466, 63
      %s468 = scalar_select %p467, %s466, 63
      %s469 = smul.addr %s468, 4
      %s470 = scalar_lea.vmem %s3, %s469
      // Predicated region
      $region33: #{bottleneck_forward.3} parent=31 // pred_check
        %p471 = pneg %p100
      $region34: #{bottleneck_forward.3} parent=31 // pred_check_branch
        %473 = sbr.rel (%p471) target = $region36
      $region35: #{bottleneck_forward.3} parent=31 // pred_region
        %s474 = smul.u32 32, %s14
      $region36: #{bottleneck_forward.3} parent=31 // pred_fallthru
        _
    $region32: #{bottleneck_forward.3} parent=5 // pred_fallthru
      _
    %p475 = scmp.le.s32.totalorder 2, %s9
    // Predicated region
    $region37: #{bottleneck_forward.3} parent=5 // pred_check
      %p476 = pneg %p475
    $region38: #{bottleneck_forward.3} parent=5 // pred_check_branch
      %478 = sbr.rel (%p476) target = $region40
    $region39: #{bottleneck_forward.3} parent=5 // pred_region
      %s479 = ssub.s32 %s9, 2
      // Predicated region
      $region41: #{bottleneck_forward.3} parent=39 // pred_check
        %p480 = pneg %p106
      $region42: #{bottleneck_forward.3} parent=39 // pred_check_branch
        %482 = sbr.rel (%p480) target = $region44
      $region43: #{bottleneck_forward.3} parent=39 // pred_region
        %s483 = smul.u32 32, %s15
        %p484 = scmp.lt.s32.totalorder %s483, 63
        %s485 = scalar_select %p484, %s483, 63
        %s486 = smul.addr %s485, 4
        %s487 = scalar_lea.vmem %s3, %s486
      $region44: #{bottleneck_forward.3} parent=39 // pred_fallthru
        _
    $region40: #{bottleneck_forward.3} parent=5 // pred_fallthru
      _
  $region6: #{bottleneck_forward.3} parent=0 // loop_footer
    %s13 = sadd.s32 1, %s9
  $region7: #{bottleneck_forward.3} parent=0 // loop_footer_branch
    %8 = sbr.rel target = $region3
  $region8: #{bottleneck_forward.3} parent=0 // loop_exit
    _

// kernel: bottleneck_forward.4
$region0: #{bottleneck_forward.4}
  #allocation0 [shape = 'u32[]', space=smem, size = 0x4, offset = 0x4, fixed_abs, tag = 'smem constant byte address 0x4 - core index']
  #allocation1 [shape = 'u32[72,128]{1,0:T(1,128)}', space=vmem, size = 0x9000, scoped, tag = 'internal scratch']
  #allocation2 [shape = 'f32[8,128]{1,0:T(8,128)}', space=vmem, size = 0x1000, scoped, tag = 'scratch operand']
  %s0 = inlined_call_operand.vmem [shape: bf16[2,18,9,2,128], index: 0, kind: input, shape index: {}]
  %s1 = inlined_call_operand.vmem [shape: bf16[9,128,128], index: 1, kind: input, shape index: {}]
  %s2 = inlined_call_operand.vmem [shape: f32[1,128], index: 2, kind: input, shape index: {}]
  %s3 = inlined_call_operand.vmem [shape: bf16[2,8,8,128], index: 3, kind: output, shape index: {}]
  %s4 = sld [smem:[#allocation0]]
  $region53: #{bottleneck_forward.4} parent=0
    _
  %s6 = ssub.s32 1, %s4
  %s7 = scalar_select 0, %s6, %s4
  loop: start=0, step=1, limit=50
  $region2: #{bottleneck_forward.4} parent=0 // loop_pre_header
    _
  $region3: #{bottleneck_forward.4} parent=0 // loop_header
    %s9 = sphi 0, %s13
    %p10 = scmp.ge.s32.totalorder %s9, 50
    %s16 = sphi 0, %s35
    %s17 = sphi 0, %s31
    %s18 = sphi 0, %s27
    %s19 = sphi 0, %s16
    %s20 = sphi 0, %s17
    %s21 = sphi 0, %s18
    %s22 = sphi 0, %s19
    %s23 = sphi 0, %s20
    %s24 = sphi 0, %s21
    %s44 = sphi 0, %s46
    %s47 = sphi 0, %s44
    %s48 = sphi 0, %s47
    %s64 = sphi 0, %s48
    %s68 = sphi 0, %s68
    %s70 = sphi 0, %s68
    %s71 = sphi 0, %s70
    %s85 = sphi 0, %s71
    %s89 = sphi 0, %s89
    %s91 = sphi 0, %s89
    %s92 = sphi 0, %s91
    %s106 = sphi 0, %s92
    %s114 = sphi 0, %s116
    %s117 = sphi 0, %s114
    %s118 = sphi 0, %s117
    %s134 = sphi 0, %s118
  $region4: #{bottleneck_forward.4} parent=0 // loop_header_branch
    %12 = sbr.rel (%p10) target = $region8
  $region5: #{bottleneck_forward.4} parent=0 // loop_body
    %s14 = ssub.s32 %s9, 1
    %s15 = ssub.s32 %s9, 2
    %s25 = sadd.s32 1, %s18
    %p26 = scmp.ge.s32.totalorder %s25, 3
    %s27 = scalar_select %p26, 0, %s25
    %s28 = sadd.s32 1, %s17
    %s29 = scalar_select %p26, %s28, %s17
    %p30 = scmp.ge.s32.totalorder %s29, 8
    %s31 = scalar_select %p30, 0, %s29
    %s32 = sadd.s32 1, %s16
    %s33 = scalar_select %p30, %s32, %s16
    %p34 = scmp.ge.s32.totalorder %s33, 2
    %s35 = scalar_select %p34, 0, %s33
    %s36 = smul.u32 %s17, 2
    %s37 = sadd.s32 %s36, %s18
    %s38 = smul.u32 %s31, 2
    %s39 = sadd.s32 %s38, %s27
    %s40 = ssub.s32 %s16, %s35
    %s41 = ssub.s32 %s37, %s39
    %s42 = sor.u32 %s40, %s41
    %p43 = scmp.eq.s32.totalorder %s42, 0
    %s45 = sadd.s32 %s44, 1
    %s46 = scalar_select %p43, %s44, %s45
    %p49 = pneg %p43
    %p50 = scmp.eq.s32.totalorder %s9, 47
    %p51 = por %p49, %p50
    %p52 = scmp.ne.s32.totalorder %s44, %s47
    %p53 = scmp.eq.s32.totalorder %s9, 0
    %p54 = por %p52, %p53
    %p55 = scmp.ne.s32.totalorder %s44, %s47
    %p56 = scmp.eq.s32.totalorder %s14, 47
    %p57 = por %p55, %p56
    %p58 = scmp.ne.s32.totalorder %s47, %s48
    %p59 = scmp.eq.s32.totalorder %s14, 0
    %p60 = por %p58, %p59
    %p61 = scmp.ne.s32.totalorder %s47, %s48
    %p62 = scmp.eq.s32.totalorder %s15, 47
    %p63 = por %p61, %p62
    %p65 = scmp.ne.s32.totalorder %s48, %s64
    %p66 = scmp.eq.s32.totalorder %s15, 0
    %p67 = por %p65, %p66
    %s69 = sadd.s32 %s68, 1
    %p72 = scmp.eq.s32.totalorder %s9, 47
    %p73 = scmp.ne.s32.totalorder %s68, %s70
    %p74 = scmp.eq.s32.totalorder %s9, 0
    %p75 = por %p73, %p74
    %p76 = scmp.ne.s32.totalorder %s68, %s70
    %p77 = scmp.eq.s32.totalorder %s14, 47
    %p78 = por %p76, %p77
    %p79 = scmp.ne.s32.totalorder %s70, %s71
    %p80 = scmp.eq.s32.totalorder %s14, 0
    %p81 = por %p79, %p80
    %p82 = scmp.ne.s32.totalorder %s70, %s71
    %p83 = scmp.eq.s32.totalorder %s15, 47
    %p84 = por %p82, %p83
    %p86 = scmp.ne.s32.totalorder %s71, %s85
    %p87 = scmp.eq.s32.totalorder %s15, 0
    %p88 = por %p86, %p87
    %s90 = sadd.s32 %s89, 1
    %p93 = scmp.eq.s32.totalorder %s9, 47
    %p94 = scmp.ne.s32.totalorder %s89, %s91
    %p95 = scmp.eq.s32.totalorder %s9, 0
    %p96 = por %p94, %p95
    %p97 = scmp.ne.s32.totalorder %s89, %s91
    %p98 = scmp.eq.s32.totalorder %s14, 47
    %p99 = por %p97, %p98
    %p100 = scmp.ne.s32.totalorder %s91, %s92
    %p101 = scmp.eq.s32.totalorder %s14, 0
    %p102 = por %p100, %p101
    %p103 = scmp.ne.s32.totalorder %s91, %s92
    %p104 = scmp.eq.s32.totalorder %s15, 47
    %p105 = por %p103, %p104
    %p107 = scmp.ne.s32.totalorder %s92, %s106
    %p108 = scmp.eq.s32.totalorder %s15, 0
    %p109 = por %p107, %p108
    %s110 = ssub.s32 %s16, %s35
    %s111 = ssub.s32 %s17, %s31
    %s112 = sor.u32 %s110, %s111
    %p113 = scmp.eq.s32.totalorder %s112, 0
    %s115 = sadd.s32 %s114, 1
    %s116 = scalar_select %p113, %s114, %s115
    %p119 = pneg %p113
    %p120 = scmp.eq.s32.totalorder %s9, 47
    %p121 = por %p119, %p120
    %p122 = scmp.ne.s32.totalorder %s114, %s117
    %p123 = scmp.eq.s32.totalorder %s9, 0
    %p124 = por %p122, %p123
    %p125 = scmp.ne.s32.totalorder %s114, %s117
    %p126 = scmp.eq.s32.totalorder %s14, 47
    %p127 = por %p125, %p126
    %p128 = scmp.ne.s32.totalorder %s117, %s118
    %p129 = scmp.eq.s32.totalorder %s14, 0
    %p130 = por %p128, %p129
    %p131 = scmp.ne.s32.totalorder %s117, %s118
    %p132 = scmp.eq.s32.totalorder %s15, 47
    %p133 = por %p131, %p132
    %p135 = scmp.ne.s32.totalorder %s118, %s134
    %p136 = scmp.eq.s32.totalorder %s15, 0
    %p137 = por %p135, %p136
    %p138 = scmp.le.s32.totalorder 1, %s9
    %p139 = scmp.lt.s32.totalorder %s9, 49
    %p140 = pnand %p138, %p139
    %p141 = pneg %p140
    // Predicated region
    $region9: #{bottleneck_forward.4} parent=5 // pred_check
      _
    $region10: #{bottleneck_forward.4} parent=5 // pred_check_branch
      %143 = sbr.rel (%p140) target = $region12
    $region11: #{bottleneck_forward.4} parent=5 // pred_region
      %s144 = ssub.s32 %s9, 1
      // Predicated region
      $region13: #{bottleneck_forward.4} parent=11 // pred_check
        %p145 = pneg %p81
      $region14: #{bottleneck_forward.4} parent=11 // pred_check_branch
        %147 = sbr.rel (%p145) target = $region16
      $region15: #{bottleneck_forward.4} parent=11 // pred_region
        _
      $region16: #{bottleneck_forward.4} parent=11 // pred_fallthru
        _
      // Predicated region
      $region17: #{bottleneck_forward.4} parent=11 // pred_check
        %p148 = pneg %p102
      $region18: #{bottleneck_forward.4} parent=11 // pred_check_branch
        %150 = sbr.rel (%p148) target = $region20
      $region19: #{bottleneck_forward.4} parent=11 // pred_region
        _
      $region20: #{bottleneck_forward.4} parent=11 // pred_fallthru
        _
    $region12: #{bottleneck_forward.4} parent=5 // pred_fallthru
      _
    %p151 = scmp.lt.s32.totalorder %s9, 48
    // Predicated region
    $region21: #{bottleneck_forward.4} parent=5 // pred_check
      %p152 = pneg %p151
    $region22: #{bottleneck_forward.4} parent=5 // pred_check_branch
      %154 = sbr.rel (%p152) target = $region24
    $region23: #{bottleneck_forward.4} parent=5 // pred_region
      // Predicated region
      $region25: #{bottleneck_forward.4} parent=23 // pred_check
        %p155 = pneg %p54
      $region26: #{bottleneck_forward.4} parent=23 // pred_check_branch
        %157 = sbr.rel (%p155) target = $region28
      $region27: #{bottleneck_forward.4} parent=23 // pred_region
        %s158 = smul.u32 %s17, 2
        %s159 = sadd.s32 %s158, %s18
        %p160 = scmp.lt.s32.totalorder %s16, 1
        %s161 = scalar_select %p160, %s16, 1
        %p162 = scmp.lt.s32.totalorder %s159, 17
        %s163 = scalar_select %p162, %s159, 17
        %s164 = smul.addr %s163, 9
        %s165 = smul.addr %s161, 162
        %s166 = sadd.s32 %s164, %s165
        %s167 = scalar_lea.vmem %s0, %s166
        %s168 = smul.u32 %s17, 2
        %s169 = sadd.s32 %s168, %s18
      $region28: #{bottleneck_forward.4} parent=23 // pred_fallthru
        _
    $region24: #{bottleneck_forward.4} parent=5 // pred_fallthru
      _
    %p170 = scmp.le.s32.totalorder 1, %s9
    %p171 = scmp.lt.s32.totalorder %s9, 49
    %p172 = pnand %p170, %p171
    %p173 = pneg %p172
    // Predicated region
    $region29: #{bottleneck_forward.4} parent=5 // pred_check
      _
    $region30: #{bottleneck_forward.4} parent=5 // pred_check_branch
      %175 = sbr.rel (%p172) target = $region32
    $region31: #{bottleneck_forward.4} parent=5 // pred_region
      %s176 = ssub.s32 %s9, 1
      %s177 = smul.u32 %s20, 2
      %s178 = sadd.s32 %s177, %s21
      %p179 = scmp.lt.s32.totalorder %s19, 1
      %s180 = scalar_select %p179, %s19, 1
      %p181 = scmp.lt.s32.totalorder %s178, 17
      %s182 = scalar_select %p181, %s178, 17
      %s183 = smul.addr %s182, 9
      %s184 = smul.addr %s180, 162
      %s185 = sadd.s32 %s183, %s184
      %s186 = scalar_lea.vmem %s0, %s185
      %p187 = pneg %p60
      %p188 = pneg %p57
      %p189 = pneg %p81
      %p190 = pneg %p78
      %p191 = pneg %p102
      %p192 = pneg %p99
      %p193 = pneg %p130
      %p194 = pneg %p127
      %p195 = scmp.lt.s32.totalorder %s19, 1
      %s196 = scalar_select %p195, %s19, 1
      %p197 = scmp.lt.s32.totalorder %s20, 7
      %s198 = scalar_select %p197, %s20, 7
      %s199 = smul.addr %s196, 8
      %s200 = sadd.s32 %s198, %s199
      %s201 = smul.addr %s200, 4
      %s202 = scalar_lea.vmem %s3, %s201
      %s203 = smul.u32 %s20, 2
      %s204 = sadd.s32 %s203, %s21
      %p205 = scmp.lt.s32.totalorder %s19, 1
      %s206 = scalar_select %p205, %s19, 1
      %p207 = scmp.lt.s32.totalorder %s204, 17
      %s208 = scalar_select %p207, %s204, 17
      %s209 = smul.addr %s208, 9
      %s210 = smul.addr %s206, 162
      %s211 = sadd.s32 %s209, %s210
      %s212 = scalar_lea.vmem %s0, %s211
      %s213 = smul.u32 %s20, 2
      %s214 = sadd.s32 %s213, %s21
      %p215 = scmp.lt.s32.totalorder %s19, 1
      %s216 = scalar_select %p215, %s19, 1
      %p217 = scmp.lt.s32.totalorder %s20, 7
      %s218 = scalar_select %p217, %s20, 7
      %s219 = smul.addr %s216, 8
      %s220 = sadd.s32 %s218, %s219
      %s221 = smul.addr %s220, 4
      %s222 = scalar_lea.vmem %s3, %s221
      %p223 = scmp.eq.s32.totalorder %s21, 0
      // Predicated region
      $region33: #{bottleneck_forward.4} parent=31 // pred_check
        %p224 = pneg %p223
      $region34: #{bottleneck_forward.4} parent=31 // pred_check_branch
        %226 = sbr.rel (%p224) target = $region36
      $region35: #{bottleneck_forward.4} parent=31 // pred_region
        %227 = vst [vmem:[#allocation2] sm:$0xff] 0.0
      $region36: #{bottleneck_forward.4} parent=31 // pred_fallthru
        _
      %v228 = vld [vmem:[%s212] sm:$0x1]
      %v229 = vld [vmem:[%s212 + $0x1] sm:$0x1]
      %v230 = vld [vmem:[%s212 + $0x2] sm:$0x1]
      %v231 = vld [vmem:[%s212 + $0x3] sm:$0x1]
      %v232 = vld [vmem:[%s212 + $0x4] sm:$0x1]
      %v233 = vld [vmem:[%s212 + $0x5] sm:$0x1]
      %v234 = vld [vmem:[%s212 + $0x6] sm:$0x1]
      %v235 = vld [vmem:[%s212 + $0x7] sm:$0x1]
      %v236 = vld [vmem:[#allocation2] sm:$0xff]
      %s237 = smul.u32 %s21, 3
      %s238 = smul.u32 %s237, 16
      %s239 = smul.addr %s238, 4
      %s240 = scalar_lea.vmem %s1, %s239
      %v241 = vld [vmem:[%s240] sm:$0xf]
      %v242 = vld [vmem:[%s240 + $0x4] sm:$0xf]
      %v243 = vld [vmem:[%s240 + $0x8] sm:$0xf]
      %v244 = vld [vmem:[%s240 + $0xc] sm:$0xf]
      %v245 = vld [vmem:[%s240 + $0x10] sm:$0xf]
      %v246 = vld [vmem:[%s240 + $0x14] sm:$0xf]
      %v247 = vld [vmem:[%s240 + $0x18] sm:$0xf]
      %v248 = vld [vmem:[%s240 + $0x1c] sm:$0xf]
      %v249 = vld [vmem:[%s240 + $0x20] sm:$0xf]
      %v250 = vld [vmem:[%s240 + $0x24] sm:$0xf]
      %v251 = vld [vmem:[%s240 + $0x28] sm:$0xf]
      %v252 = vld [vmem:[%s240 + $0x2c] sm:$0xf]
      %v253 = vld [vmem:[%s240 + $0x30] sm:$0xf]
      %v254 = vld [vmem:[%s240 + $0x34] sm:$0xf]
      %v255 = vld [vmem:[%s240 + $0x38] sm:$0xf]
      %v256 = vld [vmem:[%s240 + $0x3c] sm:$0xf]
      %258 = vst [vmem:[#allocation1] ss:$9 sm:$0xff] %v228
      %v259 = vld [vmem:[#allocation1] sm:$0xff]
      %262 = vst [vmem:[#allocation1] ss:$9 sm:$0xff] %v229
      %v263 = vld [vmem:[#allocation1] sm:$0xff]
      %266 = vst [vmem:[#allocation1] ss:$9 sm:$0xff] %v230
      %v267 = vld [vmem:[#allocation1] sm:$0xff]
      %270 = vst [vmem:[#allocation1] ss:$9 sm:$0xff] %v231
      %v271 = vld [vmem:[#allocation1] sm:$0xff]
      %274 = vst [vmem:[#allocation1] ss:$9 sm:$0xff] %v232
      %v275 = vld [vmem:[#allocation1] sm:$0xff]
      %278 = vst [vmem:[#allocation1] ss:$9 sm:$0xff] %v233
      %v279 = vld [vmem:[#allocation1] sm:$0xff]
      %282 = vst [vmem:[#allocation1] ss:$9 sm:$0xff] %v234
      %v283 = vld [vmem:[#allocation1] sm:$0xff]
      %286 = vst [vmem:[#allocation1] ss:$9 sm:$0xff] %v235
      %v287 = vld [vmem:[#allocation1] sm:$0xff]
      %v289 = vunpack.c.l.b16 %v259
      %v290 = vunpack.c.l.b16 %v263
      %v291 = vunpack.c.l.b16 %v267
      %v292 = vunpack.c.l.b16 %v271
      %v293 = vunpack.c.l.b16 %v275
      %v294 = vunpack.c.l.b16 %v279
      %v295 = vunpack.c.l.b16 %v283
      %v296 = vunpack.c.l.b16 %v287
      %v297 = vrot.slane %v290, 7
      %vm298 = vcmask 1041409
      %v299 = vsel %vm298, %v297, %v289
      %v300 = vrot.slane %v291, 6
      %vm301 = vcmask 1042434
      %v302 = vsel %vm301, %v300, %v299
      %v303 = vrot.slane %v292, 5
      %vm304 = vcmask 1043459
      %v305 = vsel %vm304, %v303, %v302
      %v306 = vrot.slane %v293, 4
      %vm307 = vcmask 1044484
      %v308 = vsel %vm307, %v306, %v305
      %v309 = vrot.slane %v294, 3
      %vm310 = vcmask 1045509
      %v311 = vsel %vm310, %v309, %v308
      %v312 = vrot.slane %v295, 2
      %vm313 = vcmask 1046534
      %v314 = vsel %vm313, %v312, %v311
      %v315 = vrot.slane %v296, 1
      %vm316 = vcmask 1047559
      %v317 = vsel %vm316, %v315, %v314
      %v318 = vpack.c.b16 %v317, %v317
      %v336 = vunpack.c.l.b16 %v241
      %v337 = vunpack.c.l.b16 %v242
      %v338 = vunpack.c.l.b16 %v243
      %v339 = vunpack.c.l.b16 %v244
      %v340 = vunpack.c.l.b16 %v245
      %v341 = vunpack.c.l.b16 %v246
      %v342 = vunpack.c.l.b16 %v247
      %v343 = vunpack.c.l.b16 %v248
      %v344 = vunpack.c.l.b16 %v249
      %v345 = vunpack.c.l.b16 %v250
      %v346 = vunpack.c.l.b16 %v251
      %v347 = vunpack.c.l.b16 %v252
      %v348 = vunpack.c.l.b16 %v253
      %v349 = vunpack.c.l.b16 %v254
      %v350 = vunpack.c.l.b16 %v255
      %v351 = vunpack.c.l.b16 %v256
      %v352 = vpack.c.b16 %v337, %v336
      %v353 = vpack.c.b16 %v339, %v338
      %v354 = vpack.c.b16 %v341, %v340
      %v355 = vpack.c.b16 %v343, %v342
      %v356 = vpack.c.b16 %v345, %v344
      %v357 = vpack.c.b16 %v347, %v346
      %v358 = vpack.c.b16 %v349, %v348
      %v359 = vpack.c.b16 %v351, %v350
      %368 = vmatpush.bf16.msra.mxu0 %v359
      %369 = vmatpush.bf16.msra.mxu0 %v358
      %370 = vmatpush.bf16.msra.mxu0 %v357
      %371 = vmatpush.bf16.msra.mxu0 %v356
      %372 = vmatpush.bf16.msra.mxu0 %v355
      %373 = vmatpush.bf16.msra.mxu0 %v354
      %374 = vmatpush.bf16.msra.mxu0 %v353
      %375 = vmatpush.bf16.msra.mxu0 %v352
      %376 = vmatmul.bf16.gmra.mxu0 %v318
      %v377 = vpop.f32.mrf.mxu0
      %v378 = vadd.f32 0.0, %v377
      %v379 = vpop.f32.mrf.mxu0
      %380 = vdwg.mxu0
      %v381 = vadd.f32 %v236, %v378
      %382 = vst [vmem:[#allocation2] sm:$0xff] %v381
      %v383 = vld [vmem:[%s212] sm:$0x1]
      %v384 = vld [vmem:[%s212 + $0x1] sm:$0x1]
      %v385 = vld [vmem:[%s212 + $0x2] sm:$0x1]
      %v386 = vld [vmem:[%s212 + $0x3] sm:$0x1]
      %v387 = vld [vmem:[%s212 + $0x4] sm:$0x1]
      %v388 = vld [vmem:[%s212 + $0x5] sm:$0x1]
      %v389 = vld [vmem:[%s212 + $0x6] sm:$0x1]
      %v390 = vld [vmem:[%s212 + $0x7] sm:$0x1]
      %v391 = vld [vmem:[#allocation2] sm:$0xff]
      %s392 = sadd.s32 %s237, 1
      %s393 = smul.u32 %s392, 16
      %s394 = smul.addr %s393, 4
      %s395 = scalar_lea.vmem %s1, %s394
      %v396 = vld [vmem:[%s395] sm:$0xf]
      %v397 = vld [vmem:[%s395 + $0x4] sm:$0xf]
      %v398 = vld [vmem:[%s395 + $0x8] sm:$0xf]
      %v399 = vld [vmem:[%s395 + $0xc] sm:$0xf]
      %v400 = vld [vmem:[%s395 + $0x10] sm:$0xf]
      %v401 = vld [vmem:[%s395 + $0x14] sm:$0xf]
      %v402 = vld [vmem:[%s395 + $0x18] sm:$0xf]
      %v403 = vld [vmem:[%s395 + $0x1c] sm:$0xf]
      %v404 = vld [vmem:[%s395 + $0x20] sm:$0xf]
      %v405 = vld [vmem:[%s395 + $0x24] sm:$0xf]
      %v406 = vld [vmem:[%s395 + $0x28] sm:$0xf]
      %v407 = vld [vmem:[%s395 + $0x2c] sm:$0xf]
      %v408 = vld [vmem:[%s395 + $0x30] sm:$0xf]
      %v409 = vld [vmem:[%s395 + $0x34] sm:$0xf]
      %v410 = vld [vmem:[%s395 + $0x38] sm:$0xf]
      %v411 = vld [vmem:[%s395 + $0x3c] sm:$0xf]
      %413 = vst [vmem:[#allocation1] ss:$9 sm:$0xff] %v383
      %v414 = vld [vmem:[#allocation1] sm:$0xff]
      %417 = vst [vmem:[#allocation1] ss:$9 sm:$0xff] %v384
      %v418 = vld [vmem:[#allocation1] sm:$0xff]
      %421 = vst [vmem:[#allocation1] ss:$9 sm:$0xff] %v385
      %v422 = vld [vmem:[#allocation1] sm:$0xff]
      %425 = vst [vmem:[#allocation1] ss:$9 sm:$0xff] %v386
      %v426 = vld [vmem:[#allocation1] sm:$0xff]
      %429 = vst [vmem:[#allocation1] ss:$9 sm:$0xff] %v387
      %v430 = vld [vmem:[#allocation1] sm:$0xff]
      %433 = vst [vmem:[#allocation1] ss:$9 sm:$0xff] %v388
      %v434 = vld [vmem:[#allocation1] sm:$0xff]
      %437 = vst [vmem:[#allocation1] ss:$9 sm:$0xff] %v389
      %v438 = vld [vmem:[#allocation1] sm:$0xff]
      %441 = vst [vmem:[#allocation1] ss:$9 sm:$0xff] %v390
      %v442 = vld [vmem:[#allocation1] sm:$0xff]
      %v444 = vunpack.c.l.b16 %v414
      %v445 = vunpack.c.l.b16 %v418
      %v446 = vunpack.c.l.b16 %v422
      %v447 = vunpack.c.l.b16 %v426
      %v448 = vunpack.c.l.b16 %v430
      %v449 = vunpack.c.l.b16 %v434
      %v450 = vunpack.c.l.b16 %v438
      %v451 = vunpack.c.l.b16 %v442
      %v452 = vrot.slane %v444, 1
      %v453 = vsel %vm298, %v445, %v452
      %v454 = vrot.slane %v446, 7
      %v455 = vsel %vm301, %v454, %v453
      %v456 = vrot.slane %v447, 6
      %v457 = vsel %vm304, %v456, %v455
      %v458 = vrot.slane %v448, 5
      %v459 = vsel %vm307, %v458, %v457
      %v460 = vrot.slane %v449, 4
      %v461 = vsel %vm310, %v460, %v459
      %v462 = vrot.slane %v450, 3
      %v463 = vsel %vm313, %v462, %v461
      %v464 = vrot.slane %v451, 2
      %v465 = vsel %vm316, %v464, %v463
      %v466 = vpack.c.b16 %v465, %v465
      %v484 = vunpack.c.l.b16 %v396
      %v485 = vunpack.c.l.b16 %v397
      %v486 = vunpack.c.l.b16 %v398
      %v487 = vunpack.c.l.b16 %v399
      %v488 = vunpack.c.l.b16 %v400
      %v489 = vunpack.c.l.b16 %v401
      %v490 = vunpack.c.l.b16 %v402
      %v491 = vunpack.c.l.b16 %v403
      %v492 = vunpack.c.l.b16 %v404
      %v493 = vunpack.c.l.b16 %v405
      %v494 = vunpack.c.l.b16 %v406
      %v495 = vunpack.c.l.b16 %v407
      %v496 = vunpack.c.l.b16 %v408
      %v497 = vunpack.c.l.b16 %v409
      %v498 = vunpack.c.l.b16 %v410
      %v499 = vunpack.c.l.b16 %v411
      %v500 = vpack.c.b16 %v485, %v484
      %v501 = vpack.c.b16 %v487, %v486
      %v502 = vpack.c.b16 %v489, %v488
      %v503 = vpack.c.b16 %v491, %v490
      %v504 = vpack.c.b16 %v493, %v492
      %v505 = vpack.c.b16 %v495, %v494
      %v506 = vpack.c.b16 %v497, %v496
      %v507 = vpack.c.b16 %v499, %v498
      %516 = vmatpush.bf16.msra.mxu0 %v507
      %517 = vmatpush.bf16.msra.mxu0 %v506
      %518 = vmatpush.bf16.msra.mxu0 %v505
      %519 = vmatpush.bf16.msra.mxu0 %v504
      %520 = vmatpush.bf16.msra.mxu0 %v503
      %521 = vmatpush.bf16.msra.mxu0 %v502
      %522 = vmatpush.bf16.msra.mxu0 %v501
      %523 = vmatpush.bf16.msra.mxu0 %v500
      %524 = vmatmul.bf16.gmra.mxu0 %v466
      %v525 = vpop.f32.mrf.mxu0
      %v526 = vadd.f32 0.0, %v525
      %v527 = vpop.f32.mrf.mxu0
      %528 = vdwg.mxu0
      %v529 = vadd.f32 %v391, %v526
      %530 = vst [vmem:[#allocation2] sm:$0xff] %v529
      %s531 = scalar_lea.vmem %s212, 1
      %v532 = vld [vmem:[%s531] sm:$0x1]
      %v533 = vld [vmem:[%s531 + $0x1] sm:$0x1]
      %v534 = vld [vmem:[%s531 + $0x2] sm:$0x1]
      %v535 = vld [vmem:[%s531 + $0x3] sm:$0x1]
      %v536 = vld [vmem:[%s531 + $0x4] sm:$0x1]
      %v537 = vld [vmem:[%s531 + $0x5] sm:$0x1]
      %v538 = vld [vmem:[%s531 + $0x6] sm:$0x1]
      %v539 = vld [vmem:[%s531 + $0x7] sm:$0x1]
      %v540 = vld [vmem:[#allocation2] sm:$0xff]
      %s541 = sadd.s32 %s237, 2
      %s542 = smul.u32 %s541, 16
      %s543 = smul.addr %s542, 4
      %s544 = scalar_lea.vmem %s1, %s543
      %v545 = vld [vmem:[%s544] sm:$0xf]
      %v546 = vld [vmem:[%s544 + $0x4] sm:$0xf]
      %v547 = vld [vmem:[%s544 + $0x8] sm:$0xf]
      %v548 = vld [vmem:[%s544 + $0xc] sm:$0xf]
      %v549 = vld [vmem:[%s544 + $0x10] sm:$0xf]
      %v550 = vld [vmem:[%s544 + $0x14] sm:$0xf]
      %v551 = vld [vmem:[%s544 + $0x18] sm:$0xf]
      %v552 = vld [vmem:[%s544 + $0x1c] sm:$0xf]
      %v553 = vld [vmem:[%s544 + $0x20] sm:$0xf]
      %v554 = vld [vmem:[%s544 + $0x24] sm:$0xf]
      %v555 = vld [vmem:[%s544 + $0x28] sm:$0xf]
      %v556 = vld [vmem:[%s544 + $0x2c] sm:$0xf]
      %v557 = vld [vmem:[%s544 + $0x30] sm:$0xf]
      %v558 = vld [vmem:[%s544 + $0x34] sm:$0xf]
      %v559 = vld [vmem:[%s544 + $0x38] sm:$0xf]
      %v560 = vld [vmem:[%s544 + $0x3c] sm:$0xf]
      %562 = vst [vmem:[#allocation1] ss:$9 sm:$0xff] %v532
      %v563 = vld [vmem:[#allocation1] sm:$0xff]
      %566 = vst [vmem:[#allocation1] ss:$9 sm:$0xff] %v533
      %v567 = vld [vmem:[#allocation1] sm:$0xff]
      %570 = vst [vmem:[#allocation1] ss:$9 sm:$0xff] %v534
      %v571 = vld [vmem:[#allocation1] sm:$0xff]
      %574 = vst [vmem:[#allocation1] ss:$9 sm:$0xff] %v535
      %v575 = vld [vmem:[#allocation1] sm:$0xff]
      %578 = vst [vmem:[#allocation1] ss:$9 sm:$0xff] %v536
      %v579 = vld [vmem:[#allocation1] sm:$0xff]
      %582 = vst [vmem:[#allocation1] ss:$9 sm:$0xff] %v537
      %v583 = vld [vmem:[#allocation1] sm:$0xff]
      %586 = vst [vmem:[#allocation1] ss:$9 sm:$0xff] %v538
      %v587 = vld [vmem:[#allocation1] sm:$0xff]
      %590 = vst [vmem:[#allocation1] ss:$9 sm:$0xff] %v539
      %v591 = vld [vmem:[#allocation1] sm:$0xff]
      %v593 = vunpack.c.l.b16 %v563
      %v594 = vunpack.c.l.b16 %v567
      %v595 = vunpack.c.l.b16 %v571
      %v596 = vunpack.c.l.b16 %v575
      %v597 = vunpack.c.l.b16 %v579
      %v598 = vunpack.c.l.b16 %v583
      %v599 = vunpack.c.l.b16 %v587
      %v600 = vunpack.c.l.b16 %v591
      %v601 = vrot.slane %v594, 7
      %v602 = vsel %vm298, %v601, %v593
      %v603 = vrot.slane %v595, 6
      %v604 = vsel %vm301, %v603, %v602
      %v605 = vrot.slane %v596, 5
      %v606 = vsel %vm304, %v605, %v604
      %v607 = vrot.slane %v597, 4
      %v608 = vsel %vm307, %v607, %v606
      %v609 = vrot.slane %v598, 3
      %v610 = vsel %vm310, %v609, %v608
      %v611 = vrot.slane %v599, 2
      %v612 = vsel %vm313, %v611, %v610
      %v613 = vrot.slane %v600, 1
      %v614 = vsel %vm316, %v613, %v612
      %v615 = vpack.c.b16 %v614, %v614
      %v633 = vunpack.c.l.b16 %v545
      %v634 = vunpack.c.l.b16 %v546
      %v635 = vunpack.c.l.b16 %v547
      %v636 = vunpack.c.l.b16 %v548
      %v637 = vunpack.c.l.b16 %v549
      %v638 = vunpack.c.l.b16 %v550
      %v639 = vunpack.c.l.b16 %v551
      %v640 = vunpack.c.l.b16 %v552
      %v641 = vunpack.c.l.b16 %v553
      %v642 = vunpack.c.l.b16 %v554
      %v643 = vunpack.c.l.b16 %v555
      %v644 = vunpack.c.l.b16 %v556
      %v645 = vunpack.c.l.b16 %v557
      %v646 = vunpack.c.l.b16 %v558
      %v647 = vunpack.c.l.b16 %v559
      %v648 = vunpack.c.l.b16 %v560
      %v649 = vpack.c.b16 %v634, %v633
      %v650 = vpack.c.b16 %v636, %v635
      %v651 = vpack.c.b16 %v638, %v637
      %v652 = vpack.c.b16 %v640, %v639
      %v653 = vpack.c.b16 %v642, %v641
      %v654 = vpack.c.b16 %v644, %v643
      %v655 = vpack.c.b16 %v646, %v645
      %v656 = vpack.c.b16 %v648, %v647
      %665 = vmatpush.bf16.msra.mxu0 %v656
      %666 = vmatpush.bf16.msra.mxu0 %v655
      %667 = vmatpush.bf16.msra.mxu0 %v654
      %668 = vmatpush.bf16.msra.mxu0 %v653
      %669 = vmatpush.bf16.msra.mxu0 %v652
      %670 = vmatpush.bf16.msra.mxu0 %v651
      %671 = vmatpush.bf16.msra.mxu0 %v650
      %672 = vmatpush.bf16.msra.mxu0 %v649
      %673 = vmatmul.bf16.gmra.mxu0 %v615
      %v674 = vpop.f32.mrf.mxu0
      %v675 = vadd.f32 0.0, %v674
      %v676 = vpop.f32.mrf.mxu0
      %677 = vdwg.mxu0
      %v678 = vadd.f32 %v540, %v675
      %679 = vst [vmem:[#allocation2] sm:$0xff] %v678
      %p680 = scmp.eq.s32.totalorder %s21, 2
      // Predicated region
      $region37: #{bottleneck_forward.4} parent=31 // pred_check
        %p681 = pneg %p680
      $region38: #{bottleneck_forward.4} parent=31 // pred_check_branch
        %683 = sbr.rel (%p681) target = $region40
      $region39: #{bottleneck_forward.4} parent=31 // pred_region
        %v684 = vld [vmem:[#allocation2] sm:$0xff]
        %v685 = vld [vmem:[%s2] sm:$0x1]
        %v687 = vperm.slane %v685, 0
        %v689 = vadd.f32 %v684, %v687
        %v690 = vmax.f32 %v689, 0.0
        %v691 = vpack.c.bf16 %v690, %v690
        %692 = vst [vmem:[%s222] sm:$0xf] %v691
      $region40: #{bottleneck_forward.4} parent=31 // pred_fallthru
        _
      %p693 = scmp.lt.s32.totalorder %s19, 1
      %s694 = scalar_select %p693, %s19, 1
      %p695 = scmp.lt.s32.totalorder %s20, 7
      %s696 = scalar_select %p695, %s20, 7
      %s697 = smul.addr %s694, 8
      %s698 = sadd.s32 %s696, %s697
      %s699 = smul.addr %s698, 4
      %s700 = scalar_lea.vmem %s3, %s699
      // Predicated region
      $region41: #{bottleneck_forward.4} parent=31 // pred_check
        %p701 = pneg %p127
      $region42: #{bottleneck_forward.4} parent=31 // pred_check_branch
        %703 = sbr.rel (%p701) target = $region44
      $region43: #{bottleneck_forward.4} parent=31 // pred_region
        _
      $region44: #{bottleneck_forward.4} parent=31 // pred_fallthru
        _
    $region32: #{bottleneck_forward.4} parent=5 // pred_fallthru
      _
    %p704 = scmp.le.s32.totalorder 2, %s9
    // Predicated region
    $region45: #{bottleneck_forward.4} parent=5 // pred_check
      %p705 = pneg %p704
    $region46: #{bottleneck_forward.4} parent=5 // pred_check_branch
      %707 = sbr.rel (%p705) target = $region48
    $region47: #{bottleneck_forward.4} parent=5 // pred_region
      %s708 = ssub.s32 %s9, 2
      // Predicated region
      $region49: #{bottleneck_forward.4} parent=47 // pred_check
        %p709 = pneg %p133
      $region50: #{bottleneck_forward.4} parent=47 // pred_check_branch
        %711 = sbr.rel (%p709) target = $region52
      $region51: #{bottleneck_forward.4} parent=47 // pred_region
        %p712 = scmp.lt.s32.totalorder %s22, 1
        %s713 = scalar_select %p712, %s22, 1
        %p714 = scmp.lt.s32.totalorder %s23, 7
        %s715 = scalar_select %p714, %s23, 7
        %s716 = smul.addr %s713, 8
        %s717 = sadd.s32 %s715, %s716
        %s718 = smul.addr %s717, 4
        %s719 = scalar_lea.vmem %s3, %s718
      $region52: #{bottleneck_forward.4} parent=47 // pred_fallthru
        _
    $region48: #{bottleneck_forward.4} parent=5 // pred_fallthru
      _
  $region6: #{bottleneck_forward.4} parent=0 // loop_footer
    %s13 = sadd.s32 1, %s9
  $region7: #{bottleneck_forward.4} parent=0 // loop_footer_branch
    %8 = sbr.rel target = $region3
  $region8: #{bottleneck_forward.4} parent=0 // loop_exit
    _

// kernel: bottleneck_forward.5
$region0: #{bottleneck_forward.5}
  #allocation0 [shape = 'u32[]', space=smem, size = 0x4, offset = 0x4, fixed_abs, tag = 'smem constant byte address 0x4 - core index']
  #allocation1 [shape = 'u32[72,128]{1,0:T(1,128)}', space=vmem, size = 0x9000, scoped, tag = 'internal scratch']
  %s0 = inlined_call_operand.vmem [shape: bf16[2,8,8,128], index: 0, kind: input, shape index: {}]
  %s1 = inlined_call_operand.vmem [shape: bf16[128,16], index: 1, kind: input, shape index: {}]
  %s2 = inlined_call_operand.vmem [shape: f32[2,16,8,2,4], index: 2, kind: input, shape index: {}]
  %s3 = inlined_call_operand.vmem [shape: bf16[4,16], index: 3, kind: input, shape index: {}]
  %s4 = inlined_call_operand.vmem [shape: f32[1,16], index: 4, kind: input, shape index: {}]
  %s5 = inlined_call_operand.hbm [shape: f32[2,8,8,16], index: 5, kind: output, shape index: {}]
  %s6 = sld [smem:[#allocation0]]
  $region53: #{bottleneck_forward.5} parent=0
    _
  %s8 = ssub.s32 1, %s6
  %s9 = scalar_select 0, %s8, %s6
  $region1: #{bottleneck_forward.5} parent=0
    #allocation2 [shape = 'u8[8192]{0}', space=vmem, size = 0x2000, scoped, tag = 'output window, operand 0']
    #allocation3 [shape = 's32[2]{0}', space=sflag, size = 0x8, scoped, tag = 'scoped memory for bottleneck_forward.5']
    %10 = vsyncpa [#allocation3], 0
    %s11 = scalar_lea.sflag [#allocation3], 1
    %12 = vsyncpa %s11, 0
    loop: start=0, step=1, limit=18
    $region2: #{bottleneck_forward.5} parent=1 // loop_pre_header
      _
    $region3: #{bottleneck_forward.5} parent=1 // loop_header
      %s14 = sphi 0, %s18
      %p15 = scmp.ge.s32.totalorder %s14, 18
      %s21 = sphi 0, %s33
      %s22 = sphi 0, %s29
      %s23 = sphi 0, %s21
      %s24 = sphi 0, %s22
      %s25 = sphi 0, %s23
      %s26 = sphi 0, %s24
      %s38 = sphi 0, %s40
      %s41 = sphi 0, %s38
      %s42 = sphi 0, %s41
      %s58 = sphi 0, %s42
      %s62 = sphi 0, %s62
      %s64 = sphi 0, %s62
      %s65 = sphi 0, %s64
      %s79 = sphi 0, %s65
      %s89 = sphi 0, %s91
      %s92 = sphi 0, %s89
      %s93 = sphi 0, %s92
      %s109 = sphi 0, %s93
      %s113 = sphi 0, %s113
      %s115 = sphi 0, %s113
      %s116 = sphi 0, %s115
      %s130 = sphi 0, %s116
      %s134 = sphi 0, %s134
      %s136 = sphi 0, %s134
      %s137 = sphi 0, %s136
      %s151 = sphi 0, %s137
      %s159 = sphi 0, %s161
      %s162 = sphi 0, %s159
      %s163 = sphi 0, %s162
      %s179 = sphi 0, %s163
    $region4: #{bottleneck_forward.5} parent=1 // loop_header_branch
      %17 = sbr.rel (%p15) target = $region8
    $region5: #{bottleneck_forward.5} parent=1 // loop_body
      %s19 = ssub.s32 %s14, 1
      %s20 = ssub.s32 %s14, 2
      %s27 = sadd.s32 1, %s22
      %p28 = scmp.ge.s32.totalorder %s27, 8
      %s29 = scalar_select %p28, 0, %s27
      %s30 = sadd.s32 1, %s21
      %s31 = scalar_select %p28, %s30, %s21
      %p32 = scmp.ge.s32.totalorder %s31, 2
      %s33 = scalar_select %p32, 0, %s31
      %s34 = ssub.s32 %s21, %s33
      %s35 = ssub.s32 %s22, %s29
      %s36 = sor.u32 %s34, %s35
      %p37 = scmp.eq.s32.totalorder %s36, 0
      %s39 = sadd.s32 %s38, 1
      %s40 = scalar_select %p37, %s38, %s39
      %p43 = pneg %p37
      %p44 = scmp.eq.s32.totalorder %s14, 15
      %p45 = por %p43, %p44
      %p46 = scmp.ne.s32.totalorder %s38, %s41
      %p47 = scmp.eq.s32.totalorder %s14, 0
      %p48 = por %p46, %p47
      %p49 = scmp.ne.s32.totalorder %s38, %s41
      %p50 = scmp.eq.s32.totalorder %s19, 15
      %p51 = por %p49, %p50
      %p52 = scmp.ne.s32.totalorder %s41, %s42
      %p53 = scmp.eq.s32.totalorder %s19, 0
      %p54 = por %p52, %p53
      %p55 = scmp.ne.s32.totalorder %s41, %s42
      %p56 = scmp.eq.s32.totalorder %s20, 15
      %p57 = por %p55, %p56
      %p59 = scmp.ne.s32.totalorder %s42, %s58
      %p60 = scmp.eq.s32.totalorder %s20, 0
      %p61 = por %p59, %p60
      %s63 = sadd.s32 %s62, 1
      %p66 = scmp.eq.s32.totalorder %s14, 15
      %p67 = scmp.ne.s32.totalorder %s62, %s64
      %p68 = scmp.eq.s32.totalorder %s14, 0
      %p69 = por %p67, %p68
      %p70 = scmp.ne.s32.totalorder %s62, %s64
      %p71 = scmp.eq.s32.totalorder %s19, 15
      %p72 = por %p70, %p71
      %p73 = scmp.ne.s32.totalorder %s64, %s65
      %p74 = scmp.eq.s32.totalorder %s19, 0
      %p75 = por %p73, %p74
      %p76 = scmp.ne.s32.totalorder %s64, %s65
      %p77 = scmp.eq.s32.totalorder %s20, 15
      %p78 = por %p76, %p77
      %p80 = scmp.ne.s32.totalorder %s65, %s79
      %p81 = scmp.eq.s32.totalorder %s20, 0
      %p82 = por %p80, %p81
      %s83 = smul.u32 %s22, 2
      %s84 = smul.u32 %s29, 2
      %s85 = ssub.s32 %s21, %s33
      %s86 = ssub.s32 %s83, %s84
      %s87 = sor.u32 %s85, %s86
      %p88 = scmp.eq.s32.totalorder %s87, 0
      %s90 = sadd.s32 %s89, 1
      %s91 = scalar_select %p88, %s89, %s90
      %p94 = pneg %p88
      %p95 = scmp.eq.s32.totalorder %s14, 15
      %p96 = por %p94, %p95
      %p97 = scmp.ne.s32.totalorder %s89, %s92
      %p98 = scmp.eq.s32.totalorder %s14, 0
      %p99 = por %p97, %p98
      %p100 = scmp.ne.s32.totalorder %s89, %s92
      %p101 = scmp.eq.s32.totalorder %s19, 15
      %p102 = por %p100, %p101
      %p103 = scmp.ne.s32.totalorder %s92, %s93
      %p104 = scmp.eq.s32.totalorder %s19, 0
      %p105 = por %p103, %p104
      %p106 = scmp.ne.s32.totalorder %s92, %s93
      %p107 = scmp.eq.s32.totalorder %s20, 15
      %p108 = por %p106, %p107
      %p110 = scmp.ne.s32.totalorder %s93, %s109
      %p111 = scmp.eq.s32.totalorder %s20, 0
      %p112 = por %p110, %p111
      %s114 = sadd.s32 %s113, 1
      %p117 = scmp.eq.s32.totalorder %s14, 15
      %p118 = scmp.ne.s32.totalorder %s113, %s115
      %p119 = scmp.eq.s32.totalorder %s14, 0
      %p120 = por %p118, %p119
      %p121 = scmp.ne.s32.totalorder %s113, %s115
      %p122 = scmp.eq.s32.totalorder %s19, 15
      %p123 = por %p121, %p122
      %p124 = scmp.ne.s32.totalorder %s115, %s116
      %p125 = scmp.eq.s32.totalorder %s19, 0
      %p126 = por %p124, %p125
      %p127 = scmp.ne.s32.totalorder %s115, %s116
      %p128 = scmp.eq.s32.totalorder %s20, 15
      %p129 = por %p127, %p128
      %p131 = scmp.ne.s32.totalorder %s116, %s130
      %p132 = scmp.eq.s32.totalorder %s20, 0
      %p133 = por %p131, %p132
      %s135 = sadd.s32 %s134, 1
      %p138 = scmp.eq.s32.totalorder %s14, 15
      %p139 = scmp.ne.s32.totalorder %s134, %s136
      %p140 = scmp.eq.s32.totalorder %s14, 0
      %p141 = por %p139, %p140
      %p142 = scmp.ne.s32.totalorder %s134, %s136
      %p143 = scmp.eq.s32.totalorder %s19, 15
      %p144 = por %p142, %p143
      %p145 = scmp.ne.s32.totalorder %s136, %s137
      %p146 = scmp.eq.s32.totalorder %s19, 0
      %p147 = por %p145, %p146
      %p148 = scmp.ne.s32.totalorder %s136, %s137
      %p149 = scmp.eq.s32.totalorder %s20, 15
      %p150 = por %p148, %p149
      %p152 = scmp.ne.s32.totalorder %s137, %s151
      %p153 = scmp.eq.s32.totalorder %s20, 0
      %p154 = por %p152, %p153
      %s155 = ssub.s32 %s21, %s33
      %s156 = ssub.s32 %s22, %s29
      %s157 = sor.u32 %s155, %s156
      %p158 = scmp.eq.s32.totalorder %s157, 0
      %s160 = sadd.s32 %s159, 1
      %s161 = scalar_select %p158, %s159, %s160
      %p164 = pneg %p158
      %p165 = scmp.eq.s32.totalorder %s14, 15
      %p166 = por %p164, %p165
      %p167 = scmp.ne.s32.totalorder %s159, %s162
      %p168 = scmp.eq.s32.totalorder %s14, 0
      %p169 = por %p167, %p168
      %p170 = scmp.ne.s32.totalorder %s159, %s162
      %p171 = scmp.eq.s32.totalorder %s19, 15
      %p172 = por %p170, %p171
      %p173 = scmp.ne.s32.totalorder %s162, %s163
      %p174 = scmp.eq.s32.totalorder %s19, 0
      %p175 = por %p173, %p174
      %p176 = scmp.ne.s32.totalorder %s162, %s163
      %p177 = scmp.eq.s32.totalorder %s20, 15
      %p178 = por %p176, %p177
      %p180 = scmp.ne.s32.totalorder %s163, %s179
      %p181 = scmp.eq.s32.totalorder %s20, 0
      %p182 = por %p180, %p181
      %p183 = scmp.le.s32.totalorder 1, %s14
      %p184 = scmp.lt.s32.totalorder %s14, 17
      %p185 = pnand %p183, %p184
      %p186 = pneg %p185
      // Predicated region
      $region9: #{bottleneck_forward.5} parent=5 // pred_check
        _
      $region10: #{bottleneck_forward.5} parent=5 // pred_check_branch
        %188 = sbr.rel (%p185) target = $region12
      $region11: #{bottleneck_forward.5} parent=5 // pred_region
        %s189 = ssub.s32 %s14, 1
        // Predicated region
        $region13: #{bottleneck_forward.5} parent=11 // pred_check
          %p190 = pneg %p75
        $region14: #{bottleneck_forward.5} parent=11 // pred_check_branch
          %192 = sbr.rel (%p190) target = $region16
        $region15: #{bottleneck_forward.5} parent=11 // pred_region
          _
        $region16: #{bottleneck_forward.5} parent=11 // pred_fallthru
          _
        // Predicated region
        $region17: #{bottleneck_forward.5} parent=11 // pred_check
          %p193 = pneg %p126
        $region18: #{bottleneck_forward.5} parent=11 // pred_check_branch
          %195 = sbr.rel (%p193) target = $region20
        $region19: #{bottleneck_forward.5} parent=11 // pred_region
          _
        $region20: #{bottleneck_forward.5} parent=11 // pred_fallthru
          _
        // Predicated region
        $region21: #{bottleneck_forward.5} parent=11 // pred_check
          %p196 = pneg %p147
        $region22: #{bottleneck_forward.5} parent=11 // pred_check_branch
          %198 = sbr.rel (%p196) target = $region24
        $region23: #{bottleneck_forward.5} parent=11 // pred_region
          _
        $region24: #{bottleneck_forward.5} parent=11 // pred_fallthru
          _
      $region12: #{bottleneck_forward.5} parent=5 // pred_fallthru
        _
      %p199 = scmp.lt.s32.totalorder %s14, 16
      // Predicated region
      $region25: #{bottleneck_forward.5} parent=5 // pred_check
        %p200 = pneg %p199
      $region26: #{bottleneck_forward.5} parent=5 // pred_check_branch
        %202 = sbr.rel (%p200) target = $region28
      $region27: #{bottleneck_forward.5} parent=5 // pred_region
        // Predicated region
        $region29: #{bottleneck_forward.5} parent=27 // pred_check
          %p203 = pneg %p48
        $region30: #{bottleneck_forward.5} parent=27 // pred_check_branch
          %205 = sbr.rel (%p203) target = $region32
        $region31: #{bottleneck_forward.5} parent=27 // pred_region
          %p206 = scmp.lt.s32.totalorder %s21, 1
          %s207 = scalar_select %p206, %s21, 1
          %p208 = scmp.lt.s32.totalorder %s22, 7
          %s209 = scalar_select %p208, %s22, 7
          %s210 = smul.addr %s207, 8
          %s211 = sadd.s32 %s209, %s210
          %s212 = smul.addr %s211, 4
          %s213 = scalar_lea.vmem %s0, %s212
        $region32: #{bottleneck_forward.5} parent=27 // pred_fallthru
          _
        // Predicated region
        $region33: #{bottleneck_forward.5} parent=27 // pred_check
          %p214 = pneg %p99
        $region34: #{bottleneck_forward.5} parent=27 // pred_check_branch
          %216 = sbr.rel (%p214) target = $region36
        $region35: #{bottleneck_forward.5} parent=27 // pred_region
          %s217 = smul.u32 %s22, 2
          %p218 = scmp.lt.s32.totalorder %s21, 1
          %s219 = scalar_select %p218, %s21, 1
          %p220 = scmp.lt.s32.totalorder %s217, 15
          %s221 = scalar_select %p220, %s217, 15
          %s222 = smul.addr %s221, 8
          %s223 = smul.addr %s219, 128
          %s224 = sadd.s32 %s222, %s223
          %s225 = smul.addr %s224, 2
          %s226 = scalar_lea.vmem %s2, %s225
          %s227 = smul.u32 %s22, 2
        $region36: #{bottleneck_forward.5} parent=27 // pred_fallthru
          _
      $region28: #{bottleneck_forward.5} parent=5 // pred_fallthru
        _
      %p228 = scmp.le.s32.totalorder 1, %s14
      %p229 = scmp.lt.s32.totalorder %s14, 17
      %p230 = pnand %p228, %p229
      %p231 = pneg %p230
      // Predicated region
      $region37: #{bottleneck_forward.5} parent=5 // pred_check
        _
      $region38: #{bottleneck_forward.5} parent=5 // pred_check_branch
        %233 = sbr.rel (%p230) target = $region40
      $region39: #{bottleneck_forward.5} parent=5 // pred_region
        %s234 = ssub.s32 %s14, 1
        %p235 = scmp.lt.s32.totalorder %s23, 1
        %s236 = scalar_select %p235, %s23, 1
        %p237 = scmp.lt.s32.totalorder %s24, 7
        %s238 = scalar_select %p237, %s24, 7
        %s239 = smul.addr %s236, 8
        %s240 = sadd.s32 %s238, %s239
        %s241 = smul.addr %s240, 4
        %s242 = scalar_lea.vmem %s0, %s241
        %p243 = pneg %p54
        %p244 = pneg %p51
        %p245 = pneg %p75
        %p246 = pneg %p72
        %s247 = smul.u32 %s24, 2
        %p248 = scmp.lt.s32.totalorder %s23, 1
        %s249 = scalar_select %p248, %s23, 1
        %p250 = scmp.lt.s32.totalorder %s247, 15
        %s251 = scalar_select %p250, %s247, 15
        %s252 = smul.addr %s251, 8
        %s253 = smul.addr %s249, 128
        %s254 = sadd.s32 %s252, %s253
        %s255 = smul.addr %s254, 2
        %s256 = scalar_lea.vmem %s2, %s255
        %p257 = pneg %p105
        %p258 = pneg %p102
        %p259 = pneg %p126
        %p260 = pneg %p123
        %p261 = pneg %p147
        %p262 = pneg %p144
        %p263 = pneg %p175
        %p264 = pneg %p172
        %s265 = sand.u32 %s162, 1
        %s266 = scalar_lea.sflag [#allocation3], %s265
        %s267 = sand.u32 %s162, 1
        %s268 = smul.addr %s267, 8
        %s269 = scalar_lea.vmem [#allocation2], %s268
        %p270 = scmp.lt.s32.totalorder %s23, 1
        %s271 = scalar_select %p270, %s23, 1
        %p272 = scmp.lt.s32.totalorder %s24, 7
        %s273 = scalar_select %p272, %s24, 7
        %s274 = smul.addr %s271, 8
        %s275 = sadd.s32 %s273, %s274
        %s276 = smul.addr %s275, 4
        %s277 = scalar_lea.vmem %s0, %s276
        %s278 = smul.u32 %s24, 2
        %p279 = scmp.lt.s32.totalorder %s23, 1
        %s280 = scalar_select %p279, %s23, 1
        %p281 = scmp.lt.s32.totalorder %s278, 15
        %s282 = scalar_select %p281, %s278, 15
        %s283 = smul.addr %s282, 8
        %s284 = smul.addr %s280, 128
        %s285 = sadd.s32 %s283, %s284
        %s286 = smul.addr %s285, 2
        %s287 = scalar_lea.vmem %s2, %s286
        %s288 = smul.u32 %s24, 2
        %v290 = vld [vmem:[%s277] sm:$0xf]
        %v291 = vld [vmem:[%s1] sm:$0xf]
        %v292 = vld [vmem:[%s1 + $0x4] sm:$0xf]
        %v293 = vld [vmem:[%s1 + $0x8] sm:$0xf]
        %v294 = vld [vmem:[%s1 + $0xc] sm:$0xf]
        %v295 = vld [vmem:[%s1 + $0x10] sm:$0xf]
        %v296 = vld [vmem:[%s1 + $0x14] sm:$0xf]
        %v297 = vld [vmem:[%s1 + $0x18] sm:$0xf]
        %v298 = vld [vmem:[%s1 + $0x1c] sm:$0xf]
        %v299 = vld [vmem:[%s1 + $0x20] sm:$0xf]
        %v300 = vld [vmem:[%s1 + $0x24] sm:$0xf]
        %v301 = vld [vmem:[%s1 + $0x28] sm:$0xf]
        %v302 = vld [vmem:[%s1 + $0x2c] sm:$0xf]
        %v303 = vld [vmem:[%s1 + $0x30] sm:$0xf]
        %v304 = vld [vmem:[%s1 + $0x34] sm:$0xf]
        %v305 = vld [vmem:[%s1 + $0x38] sm:$0xf]
        %v306 = vld [vmem:[%s1 + $0x3c] sm:$0xf]
        %v307 = vld [vmem:[%s287] sm:$0x1]
        %v308 = vld [vmem:[%s287 + $0x2] sm:$0x1]
        %v309 = vld [vmem:[%s287 + $0x4] sm:$0x1]
        %v310 = vld [vmem:[%s287 + $0x6] sm:$0x1]
        %v311 = vld [vmem:[%s287 + $0x8] sm:$0x1]
        %v312 = vld [vmem:[%s287 + $0xa] sm:$0x1]
        %v313 = vld [vmem:[%s287 + $0xc] sm:$0x1]
        %v314 = vld [vmem:[%s287 + $0xe] sm:$0x1]
        %v315 = vpack.c.bf16 %v307, %v307
        %v316 = vpack.c.bf16 %v308, %v308
        %v317 = vpack.c.bf16 %v309, %v309
        %v318 = vpack.c.bf16 %v310, %v310
        %v319 = vpack.c.bf16 %v311, %v311
        %v320 = vpack.c.bf16 %v312, %v312
        %v321 = vpack.c.bf16 %v313, %v313
        %v322 = vpack.c.bf16 %v314, %v314
        %v323 = vld [vmem:[%s3] sm:$0x3]
        %v332 = vunpack.c.l.b16 %v315
        %v333 = vunpack.c.l.b16 %v316
        %v334 = vunpack.c.l.b16 %v317
        %v335 = vunpack.c.l.b16 %v318
        %v336 = vunpack.c.l.b16 %v319
        %v337 = vunpack.c.l.b16 %v320
        %v338 = vunpack.c.l.b16 %v321
        %v339 = vunpack.c.l.b16 %v322
        %v340 = vrot.slane %v333, 7
        %vm341 = vcmask 1041409
        %v342 = vsel %vm341, %v340, %v332
        %v343 = vrot.slane %v334, 6
        %vm344 = vcmask 1042434
        %v345 = vsel %vm344, %v343, %v342
        %v346 = vrot.slane %v335, 5
        %vm347 = vcmask 1043459
        %v348 = vsel %vm347, %v346, %v345
        %v349 = vrot.slane %v336, 4
        %vm350 = vcmask 1044484
        %v351 = vsel %vm350, %v349, %v348
        %v352 = vrot.slane %v337, 3
        %vm353 = vcmask 1045509
        %v354 = vsel %vm353, %v352, %v351
        %v355 = vrot.slane %v338, 2
        %vm356 = vcmask 1046534
        %v357 = vsel %vm356, %v355, %v354
        %v358 = vrot.slane %v339, 1
        %vm359 = vcmask 1047559
        %v360 = vsel %vm359, %v358, %v357
        %v361 = vpack.c.b16 %v360, %v360
        %vm362 = vcmask 31744
        %v364 = vsel %vm362, %v361, 0
        %vm366 = vcmask 1041408
        %v368 = vsel %vm366, %v323, 0
        %370 = vmatpush.bf16.msra.mxu0 0
        %371 = vmatpush.bf16.msra.mxu0 0
        %372 = vmatpush.bf16.msra.mxu0 0
        %373 = vmatpush.bf16.msra.mxu0 0
        %374 = vmatpush.bf16.msra.mxu0 0
        %375 = vmatpush.bf16.msra.mxu0 0
        %376 = vmatpush.bf16.msra.mxu0 0
        %377 = vmatpush.bf16.msra.mxu0 %v368
        %378 = vmatmul.bf16.gmra.mxu0 %v364
        %v379 = vpop.f32.mrf.mxu0
        %v380 = vadd.f32 0.0, %v379
        %v381 = vpop.f32.mrf.mxu0
        %382 = vdwg.mxu0
        %v399 = vunpack.c.l.b16 %v291
        %v400 = vunpack.c.l.b16 %v292
        %v401 = vunpack.c.l.b16 %v293
        %v402 = vunpack.c.l.b16 %v294
        %v403 = vunpack.c.l.b16 %v295
        %v404 = vunpack.c.l.b16 %v296
        %v405 = vunpack.c.l.b16 %v297
        %v406 = vunpack.c.l.b16 %v298
        %v407 = vunpack.c.l.b16 %v299
        %v408 = vunpack.c.l.b16 %v300
        %v409 = vunpack.c.l.b16 %v301
        %v410 = vunpack.c.l.b16 %v302
        %v411 = vunpack.c.l.b16 %v303
        %v412 = vunpack.c.l.b16 %v304
        %v413 = vunpack.c.l.b16 %v305
        %v414 = vunpack.c.l.b16 %v306
        %v415 = vpack.c.b16 %v400, %v399
        %v416 = vpack.c.b16 %v402, %v401
        %v417 = vpack.c.b16 %v404, %v403
        %v418 = vpack.c.b16 %v406, %v405
        %v419 = vpack.c.b16 %v408, %v407
        %v420 = vpack.c.b16 %v410, %v409
        %v421 = vpack.c.b16 %v412, %v411
        %v422 = vpack.c.b16 %v414, %v413
        %431 = vmatpush.bf16.msra.mxu0 %v422
        %432 = vmatpush.bf16.msra.mxu0 %v421
        %433 = vmatpush.bf16.msra.mxu0 %v420
        %434 = vmatpush.bf16.msra.mxu0 %v419
        %435 = vmatpush.bf16.msra.mxu0 %v418
        %436 = vmatpush.bf16.msra.mxu0 %v417
        %437 = vmatpush.bf16.msra.mxu0 %v416
        %438 = vmatpush.bf16.msra.mxu0 %v415
        %439 = vmatmul.bf16.gmra.mxu0 %v290
        %v440 = vpop.f32.mrf.mxu0
        %v441 = vadd.f32 %v380, %v440
        %v442 = vpop.f32.mrf.mxu0
        %443 = vdwg.mxu0
        %v444 = vld [vmem:[%s4] sm:$0x1]
        %v446 = vperm.slane %v444, 0
        %v448 = vadd.f32 %v441, %v446
        %v449 = vmax.f32 %v448, 0.0
        %vm450 = vcmask 130048
        %451 = vst.msk [vmem:[%s269] sm:$0xff] %vm450, %v449
        %s452 = sand.u32 %s162, 1
        %s453 = scalar_lea.sflag [#allocation3], %s452
        %s454 = sand.u32 %s162, 1
        %s455 = smul.addr %s454, 8
        %s456 = scalar_lea.vmem [#allocation2], %s455
        // Predicated region
        $region41: #{bottleneck_forward.5} parent=39 // pred_check
          %p457 = pneg %p172
        $region42: #{bottleneck_forward.5} parent=39 // pred_check_branch
          %459 = sbr.rel (%p457) target = $region44
        $region43: #{bottleneck_forward.5} parent=39 // pred_region
          %461 = vsyncadd %s453, 0
          %s462 = smul.addr %s23, 8
          %s463 = sadd.s32 %s24, %s462
          %s464 = smul.addr %s463, 8
          %s465 = scalar_lea.hbm %s5, %s464
          %s467 = sshll.u32 %s456, 4
          %s468 = int_to_ptr.vmem [resolvable:$true] %s467
          %s469 = sshll.u32 %s465, 4
          %s470 = int_to_ptr.hbm [resolvable:$true] %s469
          %472 = dma.vmem_to_hbm [thread:$0]  %s468, 128, %s470, %s453
        $region44: #{bottleneck_forward.5} parent=39 // pred_fallthru
          _
      $region40: #{bottleneck_forward.5} parent=5 // pred_fallthru
        _
      %p473 = scmp.le.s32.totalorder 2, %s14
      // Predicated region
      $region45: #{bottleneck_forward.5} parent=5 // pred_check
        %p474 = pneg %p473
      $region46: #{bottleneck_forward.5} parent=5 // pred_check_branch
        %476 = sbr.rel (%p474) target = $region48
      $region47: #{bottleneck_forward.5} parent=5 // pred_region
        %s477 = ssub.s32 %s14, 2
        // Predicated region
        $region49: #{bottleneck_forward.5} parent=47 // pred_check
          %p478 = pneg %p178
        $region50: #{bottleneck_forward.5} parent=47 // pred_check_branch
          %480 = sbr.rel (%p478) target = $region52
        $region51: #{bottleneck_forward.5} parent=47 // pred_region
          %s481 = sand.u32 %s163, 1
          %s482 = scalar_lea.sflag [#allocation3], %s481
          %s483 = sand.u32 %s163, 1
          %s484 = smul.addr %s483, 8
          %s485 = scalar_lea.vmem [#allocation2], %s484
          %487 = dma.done %s482, 128
        $region52: #{bottleneck_forward.5} parent=47 // pred_fallthru
          _
      $region48: #{bottleneck_forward.5} parent=5 // pred_fallthru
        _
    $region6: #{bottleneck_forward.5} parent=1 // loop_footer
      %s18 = sadd.s32 1, %s14
    $region7: #{bottleneck_forward.5} parent=1 // loop_footer_branch
      %13 = sbr.rel target = $region3
    $region8: #{bottleneck_forward.5} parent=1 // loop_exit
      _
    %488 = vsyncpa [#allocation3], 1
    %s489 = scalar_lea.sflag [#allocation3], 1
    %490 = vsyncpa %s489, 1

</llo_original>
